<compile_context>
chip_gen: v7x
topology: tpu7x:2x2x1
jax: 0.10.0
libtpu: 0.0.40
codegen_flags: <defaults>
</compile_context>

<pallas_src>
import functools

import jax
import jax.numpy as jnp
from jax import lax
from jax.experimental import pallas as pl
from jax.experimental.pallas import tpu as pltpu

ATTN_EPS = 1e-6   # module eps (added element-wise to the virtual H*H / W*W products)


# ----------------------------------------------------------------------------
# Pallas kernel: one query channel (cq = grid step) of the forward pass.
# All tensors are lane-dense (B*C, H*W) slabs; hw = h*W + w.
# ----------------------------------------------------------------------------
def _attention_step_kernel(q_ref, k_ref, v_ref, aw_ref, ah_ref, z_ref, s_ref,
                           *, B, C, H, W):
    f32 = jnp.float32
    q = q_ref[...].astype(f32)      # (B*C, H*W)  query channel cq, broadcast over c
    k = k_ref[...].astype(f32)      # (B*C, H*W)
    v = v_ref[...].astype(f32)      # (B*C, H*W)
    a_w = aw_ref[...]               # (H*W, H*W)  1.0 where same h  -> sum over w, bcast
    a_h = ah_ref[...]               # (H*W, H*W)  1.0 where same w  -> sum over h, bcast

    def segsum(x, a):               # segmented sum + broadcast via MXU
        return jnp.dot(x, a, preferred_element_type=f32)

    def global_reduce(x, op):       # lane reduce first, then sublane -> (1, 1)
        return op(op(x, axis=1, keepdims=True), axis=0, keepdims=True)

    # Rank-1 separable base sums of the 'bchw,bcxy->bchx'/'->bcwy' einsums.
    qrb = segsum(q, a_w)                        # qr[b,h]   broadcast over (c, w)
    qcb = segsum(q, a_h)                        # qc[b,w]   broadcast over (c, h)
    krb = segsum(k, a_w)                        # kr[b,c,h] broadcast over w
    kcb = segsum(k, a_h)                        # kc[b,c,w] broadcast over h
    qs = jnp.sum(q, axis=1, keepdims=True)      # (B*C, 1)  total sum of query channel
    ks = jnp.sum(k, axis=1, keepdims=True)      # (B*C, 1)

    def min_max_norm(x):
        # Exact reciprocal: a near-degenerate (max-min) must not be amplified by
        # the approximate EUP reciprocal (review correctness note).
        mn = global_reduce(x, jnp.min)
        mx = global_reduce(x, jnp.max)
        return 2.0 + (x - mn) * (1.0 / (mx - mn))

    # h_row / h_col / w_row / w_col (each already broadcast to the full slab).
    m1 = min_max_norm(qs * krb + H * ATTN_EPS)
    m2 = min_max_norm(qrb * ks + H * ATTN_EPS)
    n1 = min_max_norm(qs * kcb + W * ATTN_EPS)
    n2 = min_max_norm(qcb * ks + W * ATTN_EPS)

    # Four outer-product score terms, accumulated sequentially (small live set).
    score = jnp.zeros_like(q)
    for m, n in ((m1, n1), (m1, n2), (m2, n1), (m2, n2)):
        s = m * n                               # the outer product in (h, w) lanes
        # m, n in [2, 3]  =>  s in [4, 9]: exp is safe without a max-shift, and the
        # same exp serves both the row (over W) and the column (over H) softmax.
        e = jnp.exp(s)
        inv_row = pl.reciprocal(segsum(e, a_w), approx=True)   # 1 / sum_w e
        inv_col = pl.reciprocal(segsum(e, a_h), approx=True)   # 1 / sum_h e
        rc = e * (inv_row + inv_col)            # soft_row + soft_col
        rc_mx = global_reduce(rc, jnp.max)
        score = score + rc * (1.0 / rc_mx)
    score_mx = global_reduce(score, jnp.max)
    score = score * (1.0 / score_mx)

    # z[:, cq] = einsum('bchw,bchw->bhw', score, values): sum over key channels,
    # i.e. over contiguous groups of C sublanes.
    p = score * v
    for b in range(B):
        z_ref[b:b + 1, :] = jnp.sum(p[b * C:(b + 1) * C], axis=0,
                                    keepdims=True).astype(z_ref.dtype)
    s_ref[...] = score.astype(s_ref.dtype)


# ----------------------------------------------------------------------------
# Wrapper: layout plumbing + pallas_call
# ----------------------------------------------------------------------------
def single_head_2d_attention(queries, keys, values):
    B, C, H, W = queries.shape
    HW, BC = H * W, B * C
    dtype = queries.dtype

    # Lane-dense inputs.  q is laid out per query channel, broadcast over key
    # channels, so every in-kernel tensor is row-aligned with k/v.
    qb = jnp.broadcast_to(
        jnp.transpose(queries, (1, 0, 2, 3))[:, :, None, :, :],   # (Cq, B, 1, H, W)
        (C, B, C, H, W)).reshape(C, BC, HW)
    kf = keys.reshape(BC, HW)
    vf = values.reshape(BC, HW)

    # Constant 0/1 segment matrices (folded by XLA): A_w sums over w (same h),
    # A_h sums over h (same w); both broadcast the sum back to every lane.
    ii = lax.broadcasted_iota(jnp.int32, (HW, HW), 0)
    jj = lax.broadcasted_iota(jnp.int32, (HW, HW), 1)
    a_w = jnp.where(ii // W == jj // W, 1.0, 0.0).astype(jnp.float32)
    a_h = jnp.where(ii % W == jj % W, 1.0, 0.0).astype(jnp.float32)

    kernel = functools.partial(_attention_step_kernel, B=B, C=C, H=H, W=W)

    z_flat, s_flat = pl.pallas_call(
        kernel,
        grid=(C,),                                   # one step per query channel
        in_specs=[
            pl.BlockSpec((None, BC, HW), lambda i: (i, 0, 0)),   # q slab for cq = i
            pl.BlockSpec((BC, HW), lambda i: (0, 0)),            # keys (resident)
            pl.BlockSpec((BC, HW), lambda i: (0, 0)),            # values (resident)
            pl.BlockSpec((HW, HW), lambda i: (0, 0)),            # A_w (resident)
            pl.BlockSpec((HW, HW), lambda i: (0, 0)),            # A_h (resident)
        ],
        out_specs=(
            pl.BlockSpec((None, B, HW), lambda i: (i, 0, 0)),    # z[:, cq]
            pl.BlockSpec((None, BC, HW), lambda i: (i, 0, 0)),   # score for cq
        ),
        out_shape=(
            jax.ShapeDtypeStruct((C, B, HW), jnp.float32),       # z (torch.zeros dtype)
            jax.ShapeDtypeStruct((C, BC, HW), dtype),            # per-cq attention score
        ),
        compiler_params=pltpu.CompilerParams(
            dimension_semantics=("parallel",),       # megacore split on v7x
            vmem_limit_bytes=32 * 1024 * 1024),
    )(qb, kf, vf, a_w, a_h)

    z = jnp.transpose(z_flat.reshape(C, B, H, W), (1, 0, 2, 3))   # (B, Cq, H, W)
    score = s_flat[C - 1].reshape(B, C, H, W)    # module returns last channel's score
    return z, score


# ----------------------------------------------------------------------------
# Pure-JAX reference (mirrors the PyTorch loop structure) for validation
# ----------------------------------------------------------------------------
def _reference(queries, keys, values, eps=ATTN_EPS):
    B, C, H, W = queries.shape

    def min_max_norm(x):
        return 2.0 + (x - x.min()) / (x.max() - x.min())

    def rcs(s):
        rc = jax.nn.softmax(s, axis=3) + jax.nn.softmax(s, axis=2)
        return rc / rc.max()

    outer = lambda m, n: jnp.einsum('bch,bcw->bchw', m, n)

    z_rows, score = [], None
    for idx in range(C):
        q_tem = jnp.broadcast_to(queries[:, idx:idx + 1], (B, C, H, W))
        h_x_h = jnp.einsum('bchw,bcxy->bchx', q_tem, keys) + eps
        h_row = min_max_norm(jnp.sum(h_x_h, axis=2))
        h_col = min_max_norm(jnp.sum(h_x_h, axis=3))
        w_x_w = jnp.einsum('bchw,bcxy->bcwy', q_tem, keys) + eps
        w_row = min_max_norm(jnp.sum(w_x_w, axis=2))
        w_col = min_max_norm(jnp.sum(w_x_w, axis=3))
        sc = (rcs(outer(h_row, w_row)) + rcs(outer(h_row, w_col))
              + rcs(outer(h_col, w_row)) + rcs(outer(h_col, w_col)))
        sc = sc / sc.max()
        z_rows.append(jnp.einsum('bchw,bchw->bhw', sc, values))
        score = sc
    return jnp.stack(z_rows, axis=1), score


if __name__ == "__main__":
    B, C, H, W = 2, 4, 16, 16

    root = jax.random.PRNGKey(0)
    qk, kk, vk = jax.random.split(root, 3)
    queries = jax.random.normal(qk, (B, C, H, W), jnp.float32)
    keys = jax.random.normal(kk, (B, C, H, W), jnp.float32)
    values = jax.random.normal(vk, (B, C, H, W), jnp.float32)

    fwd = jax.jit(single_head_2d_attention)
    z, score = fwd(queries, keys, values)
    jax.block_until_ready((z, score))

    assert z.shape == (B, C, H, W)
    assert score.shape == (B, C, H, W)
    assert bool(jnp.all(jnp.isfinite(z))) and bool(jnp.all(jnp.isfinite(score)))

    # Validate against the straightforward (loop/einsum) reference.  Tolerance
    # covers the approximate EUP reciprocals and MXU segment-sum rounding.
    z_ref, s_ref = jax.jit(_reference)(queries, keys, values)
    jax.block_until_ready((z_ref, s_ref))
    assert bool(jnp.allclose(z, z_ref, rtol=5e-2, atol=5e-2)), \
        float(jnp.max(jnp.abs(z - z_ref)))
    assert bool(jnp.allclose(score, s_ref, rtol=5e-2, atol=5e-2)), \
        float(jnp.max(jnp.abs(score - s_ref)))

    print("KERNEL_OK")
</pallas_src>

<mosaic_0001>
module attributes {stable_mosaic.version = 11 : i64} {
  func.func @_attention_step_kernel(%arg0: i32, %arg1: memref<1x8x256xf32, #tpu.memory_space<vmem>>, %arg2: memref<8x256xf32, #tpu.memory_space<vmem>>, %arg3: memref<8x256xf32, #tpu.memory_space<vmem>>, %arg4: memref<256x256xf32, #tpu.memory_space<vmem>>, %arg5: memref<256x256xf32, #tpu.memory_space<vmem>>, %arg6: memref<1x2x256xf32, #tpu.memory_space<vmem>>, %arg7: memref<1x8x256xf32, #tpu.memory_space<vmem>>) attributes {dimension_semantics = [#tpu.dimension_semantics<parallel>], iteration_bounds = array<i64: 4>, scalar_prefetch = 0 : i64, scratch_operands = 0 : i64, tpu.core_type = #tpu.core_type<tc>, window_params = [{transform_indices = @transform_0, window_bounds = array<i64: 1, 8, 256>}, {pipeline_mode = #tpu.pipeline_mode<synchronous>, transform_indices = @transform_1, window_bounds = array<i64: 8, 256>}, {pipeline_mode = #tpu.pipeline_mode<synchronous>, transform_indices = @transform_2, window_bounds = array<i64: 8, 256>}, {pipeline_mode = #tpu.pipeline_mode<synchronous>, transform_indices = @transform_3, window_bounds = array<i64: 256, 256>}, {pipeline_mode = #tpu.pipeline_mode<synchronous>, transform_indices = @transform_4, window_bounds = array<i64: 256, 256>}, {transform_indices = @transform_5, window_bounds = array<i64: 1, 2, 256>}, {transform_indices = @transform_6, window_bounds = array<i64: 1, 8, 256>}]} {
    %c0 = arith.constant 0 : index
    %c0_0 = arith.constant 0 : index
    %c0_1 = arith.constant 0 : index
    %0 = vector.load %arg1[%c0, %c0_0, %c0_1] : memref<1x8x256xf32, #tpu.memory_space<vmem>>, vector<1x8x256xf32>
    %1 = vector.shape_cast %0 : vector<1x8x256xf32> to vector<8x256xf32>
    %c0_2 = arith.constant 0 : index
    %c0_3 = arith.constant 0 : index
    %2 = vector.load %arg2[%c0_2, %c0_3] : memref<8x256xf32, #tpu.memory_space<vmem>>, vector<8x256xf32>
    %c0_4 = arith.constant 0 : index
    %c0_5 = arith.constant 0 : index
    %3 = vector.load %arg3[%c0_4, %c0_5] : memref<8x256xf32, #tpu.memory_space<vmem>>, vector<8x256xf32>
    %c0_6 = arith.constant 0 : index
    %c0_7 = arith.constant 0 : index
    %4 = vector.load %arg4[%c0_6, %c0_7] : memref<256x256xf32, #tpu.memory_space<vmem>>, vector<256x256xf32>
    %c0_8 = arith.constant 0 : index
    %c0_9 = arith.constant 0 : index
    %5 = vector.load %arg5[%c0_8, %c0_9] : memref<256x256xf32, #tpu.memory_space<vmem>>, vector<256x256xf32>
    %cst = arith.constant dense<0.000000e+00> : vector<8x256xf32>
    %6 = tpu.matmul %1, %4, %cst {dimension_numbers = #tpu.dot_dimension_numbers<[1], [0], [0], [1], [0, 0, 1, 1], [], []>} : vector<8x256xf32>, vector<256x256xf32>, vector<8x256xf32> -> vector<8x256xf32>
    %cst_10 = arith.constant dense<0.000000e+00> : vector<8x256xf32>
    %7 = tpu.matmul %1, %5, %cst_10 {dimension_numbers = #tpu.dot_dimension_numbers<[1], [0], [0], [1], [0, 0, 1, 1], [], []>} : vector<8x256xf32>, vector<256x256xf32>, vector<8x256xf32> -> vector<8x256xf32>
    %cst_11 = arith.constant dense<0.000000e+00> : vector<8x256xf32>
    %8 = tpu.matmul %2, %4, %cst_11 {dimension_numbers = #tpu.dot_dimension_numbers<[1], [0], [0], [1], [0, 0, 1, 1], [], []>} : vector<8x256xf32>, vector<256x256xf32>, vector<8x256xf32> -> vector<8x256xf32>
    %cst_12 = arith.constant dense<0.000000e+00> : vector<8x256xf32>
    %9 = tpu.matmul %2, %5, %cst_12 {dimension_numbers = #tpu.dot_dimension_numbers<[1], [0], [0], [1], [0, 0, 1, 1], [], []>} : vector<8x256xf32>, vector<256x256xf32>, vector<8x256xf32> -> vector<8x256xf32>
    %cst_13 = arith.constant dense<0.000000e+00> : vector<8xf32>
    %10 = vector.multi_reduction <add>, %1, %cst_13 [1] : vector<8x256xf32> to vector<8xf32>
    %11 = vector.shape_cast %10 : vector<8xf32> to vector<8x1xf32>
    %cst_14 = arith.constant dense<0.000000e+00> : vector<8xf32>
    %12 = vector.multi_reduction <add>, %2, %cst_14 [1] : vector<8x256xf32> to vector<8xf32>
    %13 = vector.shape_cast %12 : vector<8xf32> to vector<8x1xf32>
    %14 = vector.broadcast %11 : vector<8x1xf32> to vector<8x256xf32>
    %15 = arith.mulf %14, %8 : vector<8x256xf32>
    %cst_15 = arith.constant 1.600000e-05 : f32
    %16 = vector.broadcast %cst_15 : f32 to vector<8x256xf32>
    %17 = arith.addf %15, %16 : vector<8x256xf32>
    %cst_16 = arith.constant dense<0x7F800000> : vector<8xf32>
    %18 = vector.multi_reduction <minimumf>, %17, %cst_16 [1] : vector<8x256xf32> to vector<8xf32>
    %19 = vector.shape_cast %18 : vector<8xf32> to vector<8x1xf32>
    %cst_17 = arith.constant dense<0x7F800000> : vector<1xf32>
    %20 = vector.multi_reduction <minimumf>, %19, %cst_17 [0] : vector<8x1xf32> to vector<1xf32>
    %21 = vector.shape_cast %20 : vector<1xf32> to vector<1x1xf32>
    %cst_18 = arith.constant dense<0xFF800000> : vector<8xf32>
    %22 = vector.multi_reduction <maximumf>, %17, %cst_18 [1] : vector<8x256xf32> to vector<8xf32>
    %23 = vector.shape_cast %22 : vector<8xf32> to vector<8x1xf32>
    %cst_19 = arith.constant dense<0xFF800000> : vector<1xf32>
    %24 = vector.multi_reduction <maximumf>, %23, %cst_19 [0] : vector<8x1xf32> to vector<1xf32>
    %25 = vector.shape_cast %24 : vector<1xf32> to vector<1x1xf32>
    %26 = vector.broadcast %21 : vector<1x1xf32> to vector<8x256xf32>
    %27 = arith.subf %17, %26 : vector<8x256xf32>
    %28 = arith.subf %25, %21 : vector<1x1xf32>
    %cst_20 = arith.constant 1.000000e+00 : f32
    %29 = vector.broadcast %cst_20 : f32 to vector<1x1xf32>
    %30 = arith.divf %29, %28 : vector<1x1xf32>
    %31 = vector.broadcast %30 : vector<1x1xf32> to vector<8x256xf32>
    %32 = arith.mulf %27, %31 : vector<8x256xf32>
    %cst_21 = arith.constant 2.000000e+00 : f32
    %33 = vector.broadcast %cst_21 : f32 to vector<8x256xf32>
    %34 = arith.addf %33, %32 : vector<8x256xf32>
    %35 = vector.broadcast %13 : vector<8x1xf32> to vector<8x256xf32>
    %36 = arith.mulf %6, %35 : vector<8x256xf32>
    %cst_22 = arith.constant 1.600000e-05 : f32
    %37 = vector.broadcast %cst_22 : f32 to vector<8x256xf32>
    %38 = arith.addf %36, %37 : vector<8x256xf32>
    %cst_23 = arith.constant dense<0x7F800000> : vector<8xf32>
    %39 = vector.multi_reduction <minimumf>, %38, %cst_23 [1] : vector<8x256xf32> to vector<8xf32>
    %40 = vector.shape_cast %39 : vector<8xf32> to vector<8x1xf32>
    %cst_24 = arith.constant dense<0x7F800000> : vector<1xf32>
    %41 = vector.multi_reduction <minimumf>, %40, %cst_24 [0] : vector<8x1xf32> to vector<1xf32>
    %42 = vector.shape_cast %41 : vector<1xf32> to vector<1x1xf32>
    %cst_25 = arith.constant dense<0xFF800000> : vector<8xf32>
    %43 = vector.multi_reduction <maximumf>, %38, %cst_25 [1] : vector<8x256xf32> to vector<8xf32>
    %44 = vector.shape_cast %43 : vector<8xf32> to vector<8x1xf32>
    %cst_26 = arith.constant dense<0xFF800000> : vector<1xf32>
    %45 = vector.multi_reduction <maximumf>, %44, %cst_26 [0] : vector<8x1xf32> to vector<1xf32>
    %46 = vector.shape_cast %45 : vector<1xf32> to vector<1x1xf32>
    %47 = vector.broadcast %42 : vector<1x1xf32> to vector<8x256xf32>
    %48 = arith.subf %38, %47 : vector<8x256xf32>
    %49 = arith.subf %46, %42 : vector<1x1xf32>
    %cst_27 = arith.constant 1.000000e+00 : f32
    %50 = vector.broadcast %cst_27 : f32 to vector<1x1xf32>
    %51 = arith.divf %50, %49 : vector<1x1xf32>
    %52 = vector.broadcast %51 : vector<1x1xf32> to vector<8x256xf32>
    %53 = arith.mulf %48, %52 : vector<8x256xf32>
    %cst_28 = arith.constant 2.000000e+00 : f32
    %54 = vector.broadcast %cst_28 : f32 to vector<8x256xf32>
    %55 = arith.addf %54, %53 : vector<8x256xf32>
    %56 = vector.broadcast %11 : vector<8x1xf32> to vector<8x256xf32>
    %57 = arith.mulf %56, %9 : vector<8x256xf32>
    %cst_29 = arith.constant 1.600000e-05 : f32
    %58 = vector.broadcast %cst_29 : f32 to vector<8x256xf32>
    %59 = arith.addf %57, %58 : vector<8x256xf32>
    %cst_30 = arith.constant dense<0x7F800000> : vector<8xf32>
    %60 = vector.multi_reduction <minimumf>, %59, %cst_30 [1] : vector<8x256xf32> to vector<8xf32>
    %61 = vector.shape_cast %60 : vector<8xf32> to vector<8x1xf32>
    %cst_31 = arith.constant dense<0x7F800000> : vector<1xf32>
    %62 = vector.multi_reduction <minimumf>, %61, %cst_31 [0] : vector<8x1xf32> to vector<1xf32>
    %63 = vector.shape_cast %62 : vector<1xf32> to vector<1x1xf32>
    %cst_32 = arith.constant dense<0xFF800000> : vector<8xf32>
    %64 = vector.multi_reduction <maximumf>, %59, %cst_32 [1] : vector<8x256xf32> to vector<8xf32>
    %65 = vector.shape_cast %64 : vector<8xf32> to vector<8x1xf32>
    %cst_33 = arith.constant dense<0xFF800000> : vector<1xf32>
    %66 = vector.multi_reduction <maximumf>, %65, %cst_33 [0] : vector<8x1xf32> to vector<1xf32>
    %67 = vector.shape_cast %66 : vector<1xf32> to vector<1x1xf32>
    %68 = vector.broadcast %63 : vector<1x1xf32> to vector<8x256xf32>
    %69 = arith.subf %59, %68 : vector<8x256xf32>
    %70 = arith.subf %67, %63 : vector<1x1xf32>
    %cst_34 = arith.constant 1.000000e+00 : f32
    %71 = vector.broadcast %cst_34 : f32 to vector<1x1xf32>
    %72 = arith.divf %71, %70 : vector<1x1xf32>
    %73 = vector.broadcast %72 : vector<1x1xf32> to vector<8x256xf32>
    %74 = arith.mulf %69, %73 : vector<8x256xf32>
    %cst_35 = arith.constant 2.000000e+00 : f32
    %75 = vector.broadcast %cst_35 : f32 to vector<8x256xf32>
    %76 = arith.addf %75, %74 : vector<8x256xf32>
    %77 = vector.broadcast %13 : vector<8x1xf32> to vector<8x256xf32>
    %78 = arith.mulf %7, %77 : vector<8x256xf32>
    %cst_36 = arith.constant 1.600000e-05 : f32
    %79 = vector.broadcast %cst_36 : f32 to vector<8x256xf32>
    %80 = arith.addf %78, %79 : vector<8x256xf32>
    %cst_37 = arith.constant dense<0x7F800000> : vector<8xf32>
    %81 = vector.multi_reduction <minimumf>, %80, %cst_37 [1] : vector<8x256xf32> to vector<8xf32>
    %82 = vector.shape_cast %81 : vector<8xf32> to vector<8x1xf32>
    %cst_38 = arith.constant dense<0x7F800000> : vector<1xf32>
    %83 = vector.multi_reduction <minimumf>, %82, %cst_38 [0] : vector<8x1xf32> to vector<1xf32>
    %84 = vector.shape_cast %83 : vector<1xf32> to vector<1x1xf32>
    %cst_39 = arith.constant dense<0xFF800000> : vector<8xf32>
    %85 = vector.multi_reduction <maximumf>, %80, %cst_39 [1] : vector<8x256xf32> to vector<8xf32>
    %86 = vector.shape_cast %85 : vector<8xf32> to vector<8x1xf32>
    %cst_40 = arith.constant dense<0xFF800000> : vector<1xf32>
    %87 = vector.multi_reduction <maximumf>, %86, %cst_40 [0] : vector<8x1xf32> to vector<1xf32>
    %88 = vector.shape_cast %87 : vector<1xf32> to vector<1x1xf32>
    %89 = vector.broadcast %84 : vector<1x1xf32> to vector<8x256xf32>
    %90 = arith.subf %80, %89 : vector<8x256xf32>
    %91 = arith.subf %88, %84 : vector<1x1xf32>
    %cst_41 = arith.constant 1.000000e+00 : f32
    %92 = vector.broadcast %cst_41 : f32 to vector<1x1xf32>
    %93 = arith.divf %92, %91 : vector<1x1xf32>
    %94 = vector.broadcast %93 : vector<1x1xf32> to vector<8x256xf32>
    %95 = arith.mulf %90, %94 : vector<8x256xf32>
    %cst_42 = arith.constant 2.000000e+00 : f32
    %96 = vector.broadcast %cst_42 : f32 to vector<8x256xf32>
    %97 = arith.addf %96, %95 : vector<8x256xf32>
    %cst_43 = arith.constant 0.000000e+00 : f32
    %98 = vector.broadcast %cst_43 : f32 to vector<8x256xf32>
    %99 = arith.mulf %34, %76 : vector<8x256xf32>
    %100 = math.exp %99 : vector<8x256xf32>
    %cst_44 = arith.constant dense<0.000000e+00> : vector<8x256xf32>
    %101 = tpu.matmul %100, %4, %cst_44 {dimension_numbers = #tpu.dot_dimension_numbers<[1], [0], [0], [1], [0, 0, 1, 1], [], []>} : vector<8x256xf32>, vector<256x256xf32>, vector<8x256xf32> -> vector<8x256xf32>
    %102 = tpu.reciprocal %101 {approx = true} : vector<8x256xf32> -> vector<8x256xf32>
    %cst_45 = arith.constant dense<0.000000e+00> : vector<8x256xf32>
    %103 = tpu.matmul %100, %5, %cst_45 {dimension_numbers = #tpu.dot_dimension_numbers<[1], [0], [0], [1], [0, 0, 1, 1], [], []>} : vector<8x256xf32>, vector<256x256xf32>, vector<8x256xf32> -> vector<8x256xf32>
    %104 = tpu.reciprocal %103 {approx = true} : vector<8x256xf32> -> vector<8x256xf32>
    %105 = arith.addf %102, %104 : vector<8x256xf32>
    %106 = arith.mulf %100, %105 : vector<8x256xf32>
    %cst_46 = arith.constant dense<0xFF800000> : vector<8xf32>
    %107 = vector.multi_reduction <maximumf>, %106, %cst_46 [1] : vector<8x256xf32> to vector<8xf32>
    %108 = vector.shape_cast %107 : vector<8xf32> to vector<8x1xf32>
    %cst_47 = arith.constant dense<0xFF800000> : vector<1xf32>
    %109 = vector.multi_reduction <maximumf>, %108, %cst_47 [0] : vector<8x1xf32> to vector<1xf32>
    %110 = vector.shape_cast %109 : vector<1xf32> to vector<1x1xf32>
    %cst_48 = arith.constant 1.000000e+00 : f32
    %111 = vector.broadcast %cst_48 : f32 to vector<1x1xf32>
    %112 = arith.divf %111, %110 : vector<1x1xf32>
    %113 = vector.broadcast %112 : vector<1x1xf32> to vector<8x256xf32>
    %114 = arith.mulf %106, %113 : vector<8x256xf32>
    %115 = arith.addf %98, %114 : vector<8x256xf32>
    %116 = arith.mulf %34, %97 : vector<8x256xf32>
    %117 = math.exp %116 : vector<8x256xf32>
    %cst_49 = arith.constant dense<0.000000e+00> : vector<8x256xf32>
    %118 = tpu.matmul %117, %4, %cst_49 {dimension_numbers = #tpu.dot_dimension_numbers<[1], [0], [0], [1], [0, 0, 1, 1], [], []>} : vector<8x256xf32>, vector<256x256xf32>, vector<8x256xf32> -> vector<8x256xf32>
    %119 = tpu.reciprocal %118 {approx = true} : vector<8x256xf32> -> vector<8x256xf32>
    %cst_50 = arith.constant dense<0.000000e+00> : vector<8x256xf32>
    %120 = tpu.matmul %117, %5, %cst_50 {dimension_numbers = #tpu.dot_dimension_numbers<[1], [0], [0], [1], [0, 0, 1, 1], [], []>} : vector<8x256xf32>, vector<256x256xf32>, vector<8x256xf32> -> vector<8x256xf32>
    %121 = tpu.reciprocal %120 {approx = true} : vector<8x256xf32> -> vector<8x256xf32>
    %122 = arith.addf %119, %121 : vector<8x256xf32>
    %123 = arith.mulf %117, %122 : vector<8x256xf32>
    %cst_51 = arith.constant dense<0xFF800000> : vector<8xf32>
    %124 = vector.multi_reduction <maximumf>, %123, %cst_51 [1] : vector<8x256xf32> to vector<8xf32>
    %125 = vector.shape_cast %124 : vector<8xf32> to vector<8x1xf32>
    %cst_52 = arith.constant dense<0xFF800000> : vector<1xf32>
    %126 = vector.multi_reduction <maximumf>, %125, %cst_52 [0] : vector<8x1xf32> to vector<1xf32>
    %127 = vector.shape_cast %126 : vector<1xf32> to vector<1x1xf32>
    %cst_53 = arith.constant 1.000000e+00 : f32
    %128 = vector.broadcast %cst_53 : f32 to vector<1x1xf32>
    %129 = arith.divf %128, %127 : vector<1x1xf32>
    %130 = vector.broadcast %129 : vector<1x1xf32> to vector<8x256xf32>
    %131 = arith.mulf %123, %130 : vector<8x256xf32>
    %132 = arith.addf %115, %131 : vector<8x256xf32>
    %133 = arith.mulf %55, %76 : vector<8x256xf32>
    %134 = math.exp %133 : vector<8x256xf32>
    %cst_54 = arith.constant dense<0.000000e+00> : vector<8x256xf32>
    %135 = tpu.matmul %134, %4, %cst_54 {dimension_numbers = #tpu.dot_dimension_numbers<[1], [0], [0], [1], [0, 0, 1, 1], [], []>} : vector<8x256xf32>, vector<256x256xf32>, vector<8x256xf32> -> vector<8x256xf32>
    %136 = tpu.reciprocal %135 {approx = true} : vector<8x256xf32> -> vector<8x256xf32>
    %cst_55 = arith.constant dense<0.000000e+00> : vector<8x256xf32>
    %137 = tpu.matmul %134, %5, %cst_55 {dimension_numbers = #tpu.dot_dimension_numbers<[1], [0], [0], [1], [0, 0, 1, 1], [], []>} : vector<8x256xf32>, vector<256x256xf32>, vector<8x256xf32> -> vector<8x256xf32>
    %138 = tpu.reciprocal %137 {approx = true} : vector<8x256xf32> -> vector<8x256xf32>
    %139 = arith.addf %136, %138 : vector<8x256xf32>
    %140 = arith.mulf %134, %139 : vector<8x256xf32>
    %cst_56 = arith.constant dense<0xFF800000> : vector<8xf32>
    %141 = vector.multi_reduction <maximumf>, %140, %cst_56 [1] : vector<8x256xf32> to vector<8xf32>
    %142 = vector.shape_cast %141 : vector<8xf32> to vector<8x1xf32>
    %cst_57 = arith.constant dense<0xFF800000> : vector<1xf32>
    %143 = vector.multi_reduction <maximumf>, %142, %cst_57 [0] : vector<8x1xf32> to vector<1xf32>
    %144 = vector.shape_cast %143 : vector<1xf32> to vector<1x1xf32>
    %cst_58 = arith.constant 1.000000e+00 : f32
    %145 = vector.broadcast %cst_58 : f32 to vector<1x1xf32>
    %146 = arith.divf %145, %144 : vector<1x1xf32>
    %147 = vector.broadcast %146 : vector<1x1xf32> to vector<8x256xf32>
    %148 = arith.mulf %140, %147 : vector<8x256xf32>
    %149 = arith.addf %132, %148 : vector<8x256xf32>
    %150 = arith.mulf %55, %97 : vector<8x256xf32>
    %151 = math.exp %150 : vector<8x256xf32>
    %cst_59 = arith.constant dense<0.000000e+00> : vector<8x256xf32>
    %152 = tpu.matmul %151, %4, %cst_59 {dimension_numbers = #tpu.dot_dimension_numbers<[1], [0], [0], [1], [0, 0, 1, 1], [], []>} : vector<8x256xf32>, vector<256x256xf32>, vector<8x256xf32> -> vector<8x256xf32>
    %153 = tpu.reciprocal %152 {approx = true} : vector<8x256xf32> -> vector<8x256xf32>
    %cst_60 = arith.constant dense<0.000000e+00> : vector<8x256xf32>
    %154 = tpu.matmul %151, %5, %cst_60 {dimension_numbers = #tpu.dot_dimension_numbers<[1], [0], [0], [1], [0, 0, 1, 1], [], []>} : vector<8x256xf32>, vector<256x256xf32>, vector<8x256xf32> -> vector<8x256xf32>
    %155 = tpu.reciprocal %154 {approx = true} : vector<8x256xf32> -> vector<8x256xf32>
    %156 = arith.addf %153, %155 : vector<8x256xf32>
    %157 = arith.mulf %151, %156 : vector<8x256xf32>
    %cst_61 = arith.constant dense<0xFF800000> : vector<8xf32>
    %158 = vector.multi_reduction <maximumf>, %157, %cst_61 [1] : vector<8x256xf32> to vector<8xf32>
    %159 = vector.shape_cast %158 : vector<8xf32> to vector<8x1xf32>
    %cst_62 = arith.constant dense<0xFF800000> : vector<1xf32>
    %160 = vector.multi_reduction <maximumf>, %159, %cst_62 [0] : vector<8x1xf32> to vector<1xf32>
    %161 = vector.shape_cast %160 : vector<1xf32> to vector<1x1xf32>
    %cst_63 = arith.constant 1.000000e+00 : f32
    %162 = vector.broadcast %cst_63 : f32 to vector<1x1xf32>
    %163 = arith.divf %162, %161 : vector<1x1xf32>
    %164 = vector.broadcast %163 : vector<1x1xf32> to vector<8x256xf32>
    %165 = arith.mulf %157, %164 : vector<8x256xf32>
    %166 = arith.addf %149, %165 : vector<8x256xf32>
    %cst_64 = arith.constant dense<0xFF800000> : vector<8xf32>
    %167 = vector.multi_reduction <maximumf>, %166, %cst_64 [1] : vector<8x256xf32> to vector<8xf32>
    %168 = vector.shape_cast %167 : vector<8xf32> to vector<8x1xf32>
    %cst_65 = arith.constant dense<0xFF800000> : vector<1xf32>
    %169 = vector.multi_reduction <maximumf>, %168, %cst_65 [0] : vector<8x1xf32> to vector<1xf32>
    %170 = vector.shape_cast %169 : vector<1xf32> to vector<1x1xf32>
    %cst_66 = arith.constant 1.000000e+00 : f32
    %171 = vector.broadcast %cst_66 : f32 to vector<1x1xf32>
    %172 = arith.divf %171, %170 : vector<1x1xf32>
    %173 = vector.broadcast %172 : vector<1x1xf32> to vector<8x256xf32>
    %174 = arith.mulf %166, %173 : vector<8x256xf32>
    %175 = arith.mulf %174, %3 : vector<8x256xf32>
    %176 = vector.extract_strided_slice %175 {offsets = [0, 0], sizes = [4, 256], strides = [1, 1]} : vector<8x256xf32> to vector<4x256xf32>
    %cst_67 = arith.constant dense<0.000000e+00> : vector<256xf32>
    %177 = vector.multi_reduction <add>, %176, %cst_67 [0] : vector<4x256xf32> to vector<256xf32>
    %178 = vector.shape_cast %177 : vector<256xf32> to vector<1x256xf32>
    %c0_68 = arith.constant 0 : index
    %c0_69 = arith.constant 0 : index
    %c0_70 = arith.constant 0 : index
    %179 = vector.load %arg6[%c0_68, %c0_69, %c0_70] : memref<1x2x256xf32, #tpu.memory_space<vmem>>, vector<1x1x256xf32>
    %180 = vector.shape_cast %179 : vector<1x1x256xf32> to vector<1x256xf32>
    %181 = vector.shape_cast %178 : vector<1x256xf32> to vector<1x1x256xf32>
    tpu.vector_store %arg6[%c0_68, %c0_69, %c0_70], %181 {strides = array<i32>} : memref<1x2x256xf32, #tpu.memory_space<vmem>>, vector<1x1x256xf32>,
    %182 = vector.extract_strided_slice %175 {offsets = [4, 0], sizes = [4, 256], strides = [1, 1]} : vector<8x256xf32> to vector<4x256xf32>
    %cst_71 = arith.constant dense<0.000000e+00> : vector<256xf32>
    %183 = vector.multi_reduction <add>, %182, %cst_71 [0] : vector<4x256xf32> to vector<256xf32>
    %184 = vector.shape_cast %183 : vector<256xf32> to vector<1x256xf32>
    %c0_72 = arith.constant 0 : index
    %c1 = arith.constant 1 : index
    %c0_73 = arith.constant 0 : index
    %185 = vector.load %arg6[%c0_72, %c1, %c0_73] : memref<1x2x256xf32, #tpu.memory_space<vmem>>, vector<1x1x256xf32>
    %186 = vector.shape_cast %185 : vector<1x1x256xf32> to vector<1x256xf32>
    %187 = vector.shape_cast %184 : vector<1x256xf32> to vector<1x1x256xf32>
    tpu.vector_store %arg6[%c0_72, %c1, %c0_73], %187 {strides = array<i32>} : memref<1x2x256xf32, #tpu.memory_space<vmem>>, vector<1x1x256xf32>,
    %c0_74 = arith.constant 0 : index
    %c0_75 = arith.constant 0 : index
    %c0_76 = arith.constant 0 : index
    %188 = vector.load %arg7[%c0_74, %c0_75, %c0_76] : memref<1x8x256xf32, #tpu.memory_space<vmem>>, vector<1x8x256xf32>
    %189 = vector.shape_cast %188 : vector<1x8x256xf32> to vector<8x256xf32>
    %190 = vector.shape_cast %174 : vector<8x256xf32> to vector<1x8x256xf32>
    tpu.vector_store %arg7[%c0_74, %c0_75, %c0_76], %190 {strides = array<i32>} : memref<1x8x256xf32, #tpu.memory_space<vmem>>, vector<1x8x256xf32>,
    return
  }
  func.func @transform_0(%arg0: i32) -> (i32, i32, i32) {
    %c0_i32 = arith.constant 0 : i32
    %c0_i32_0 = arith.constant 0 : i32
    %c0_i32_1 = arith.constant 0 : i32
    return %arg0, %c0_i32, %c0_i32_0 : i32, i32, i32
  }
  func.func @transform_1(%arg0: i32) -> (i32, i32) {
    %c0_i32 = arith.constant 0 : i32
    %c0_i32_0 = arith.constant 0 : i32
    %c0_i32_1 = arith.constant 0 : i32
    return %c0_i32, %c0_i32_0 : i32, i32
  }
  func.func @transform_2(%arg0: i32) -> (i32, i32) {
    %c0_i32 = arith.constant 0 : i32
    %c0_i32_0 = arith.constant 0 : i32
    %c0_i32_1 = arith.constant 0 : i32
    return %c0_i32, %c0_i32_0 : i32, i32
  }
  func.func @transform_3(%arg0: i32) -> (i32, i32) {
    %c0_i32 = arith.constant 0 : i32
    %c0_i32_0 = arith.constant 0 : i32
    %c0_i32_1 = arith.constant 0 : i32
    return %c0_i32, %c0_i32_0 : i32, i32
  }
  func.func @transform_4(%arg0: i32) -> (i32, i32) {
    %c0_i32 = arith.constant 0 : i32
    %c0_i32_0 = arith.constant 0 : i32
    %c0_i32_1 = arith.constant 0 : i32
    return %c0_i32, %c0_i32_0 : i32, i32
  }
  func.func @transform_5(%arg0: i32) -> (i32, i32, i32) {
    %c0_i32 = arith.constant 0 : i32
    %c0_i32_0 = arith.constant 0 : i32
    %c0_i32_1 = arith.constant 0 : i32
    return %arg0, %c0_i32, %c0_i32_0 : i32, i32, i32
  }
  func.func @transform_6(%arg0: i32) -> (i32, i32, i32) {
    %c0_i32 = arith.constant 0 : i32
    %c0_i32_0 = arith.constant 0 : i32
    %c0_i32_1 = arith.constant 0 : i32
    return %arg0, %c0_i32, %c0_i32_0 : i32, i32, i32
  }
}

</mosaic_0001>

<llo_original>
// kernel: squeeze.1
$region0: #{squeeze.1}
  %s0 = inlined_call_operand.vmem [shape: f32[1,8,256], index: 0, kind: input, shape index: {}]
  %s1 = inlined_call_operand.hbm [shape: f32[2,4,16,16], index: 1, kind: output, shape index: {}]
  $region1: #{squeeze.1} parent=0
    #allocation0 [shape = 'u8[65536]{0}', space=vmem, size = 0x10000, scoped, tag = 'operand span for operand 1']
    #allocation1 [shape = 's32[1]{0}', space=sflag, size = 0x4, scoped, tag = 'scoped memory for squeeze.1']
    %2 = vsyncpa [#allocation1], 0
    %v3 = vld [vmem:[%s0] sm:$0xff]
    %vm4 = vcmask 130048
    %5 = vst.msk [vmem:[#allocation0] ss:$16 sm:$0x3] %vm4, %v3
    %6 = vst.msk [vmem:[#allocation0] ss:$16 sm:$0xc] %vm4, %v3
    %7 = vst.msk [vmem:[#allocation0] ss:$16 sm:$0x30] %vm4, %v3
    %8 = vst.msk [vmem:[#allocation0] ss:$16 sm:$0xc0] %vm4, %v3
    %s9 = scalar_lea.vmem %s0, 8
    %v10 = vld [vmem:[%s9] sm:$0xff]
    %vm11 = vcmask 130048
    %s12 = scalar_lea.vmem [#allocation0], 8
    %13 = vst.msk [vmem:[%s12] ss:$16 sm:$0x3] %vm11, %v10
    %s14 = scalar_lea.vmem [#allocation0], 8
    %15 = vst.msk [vmem:[%s14] ss:$16 sm:$0xc] %vm11, %v10
    %s16 = scalar_lea.vmem [#allocation0], 8
    %17 = vst.msk [vmem:[%s16] ss:$16 sm:$0x30] %vm11, %v10
    %s18 = scalar_lea.vmem [#allocation0], 8
    %19 = vst.msk [vmem:[%s18] ss:$16 sm:$0xc0] %vm11, %v10
    %v20 = vld.sshfl [vmem:[%s0] sm:$0xff pattern:$0xb3a29180]
    %21 = vrot.lane.b32.xlu0 %v20, 112
    %v22 = vpop.permute.xlu0 %21
    %vm23 = vcmask 130048
    %s24 = scalar_lea.vmem [#allocation0], 1
    %25 = vst.msk [vmem:[%s24] ss:$8 sm:$0xf] %vm23, %v22
    %s26 = scalar_lea.vmem [#allocation0], 1
    %27 = vst.msk [vmem:[%s26] ss:$8 sm:$0xf0] %vm23, %v22
    %s28 = scalar_lea.vmem %s0, 4
    %v29 = vld.sshfl [vmem:[%s28] sm:$0xff pattern:$0xb3a29180]
    %30 = vrot.lane.b32.xlu0 %v29, 112
    %v31 = vpop.permute.xlu0 %30
    %vm32 = vcmask 130048
    %s33 = scalar_lea.vmem [#allocation0], 65
    %34 = vst.msk [vmem:[%s33] ss:$8 sm:$0xf] %vm32, %v31
    %s35 = scalar_lea.vmem [#allocation0], 65
    %36 = vst.msk [vmem:[%s35] ss:$8 sm:$0xf0] %vm32, %v31
    %v37 = vld.sshfl [vmem:[%s0] sm:$0xff pattern:$0xb3a29180]
    %38 = vrot.lane.b32.xlu0 %v37, 96
    %v39 = vpop.permute.xlu0 %38
    %vm40 = vcmask 130048
    %s41 = scalar_lea.vmem [#allocation0], 2
    %42 = vst.msk [vmem:[%s41] ss:$8 sm:$0xf] %vm40, %v39
    %s43 = scalar_lea.vmem [#allocation0], 2
    %44 = vst.msk [vmem:[%s43] ss:$8 sm:$0xf0] %vm40, %v39
    %s45 = scalar_lea.vmem %s0, 4
    %v46 = vld.sshfl [vmem:[%s45] sm:$0xff pattern:$0xb3a29180]
    %47 = vrot.lane.b32.xlu0 %v46, 96
    %v48 = vpop.permute.xlu0 %47
    %vm49 = vcmask 130048
    %s50 = scalar_lea.vmem [#allocation0], 66
    %51 = vst.msk [vmem:[%s50] ss:$8 sm:$0xf] %vm49, %v48
    %s52 = scalar_lea.vmem [#allocation0], 66
    %53 = vst.msk [vmem:[%s52] ss:$8 sm:$0xf0] %vm49, %v48
    %v54 = vld.sshfl [vmem:[%s0] sm:$0xff pattern:$0xb3a29180]
    %55 = vrot.lane.b32.xlu0 %v54, 80
    %v56 = vpop.permute.xlu0 %55
    %vm57 = vcmask 130048
    %s58 = scalar_lea.vmem [#allocation0], 3
    %59 = vst.msk [vmem:[%s58] ss:$8 sm:$0xf] %vm57, %v56
    %s60 = scalar_lea.vmem [#allocation0], 3
    %61 = vst.msk [vmem:[%s60] ss:$8 sm:$0xf0] %vm57, %v56
    %s62 = scalar_lea.vmem %s0, 4
    %v63 = vld.sshfl [vmem:[%s62] sm:$0xff pattern:$0xb3a29180]
    %64 = vrot.lane.b32.xlu0 %v63, 80
    %v65 = vpop.permute.xlu0 %64
    %vm66 = vcmask 130048
    %s67 = scalar_lea.vmem [#allocation0], 67
    %68 = vst.msk [vmem:[%s67] ss:$8 sm:$0xf] %vm66, %v65
    %s69 = scalar_lea.vmem [#allocation0], 67
    %70 = vst.msk [vmem:[%s69] ss:$8 sm:$0xf0] %vm66, %v65
    %v71 = vld.sshfl [vmem:[%s0] sm:$0xff pattern:$0xb3a29180]
    %72 = vrot.lane.b32.xlu0 %v71, 64
    %v73 = vpop.permute.xlu0 %72
    %vm74 = vcmask 130048
    %s75 = scalar_lea.vmem [#allocation0], 4
    %76 = vst.msk [vmem:[%s75] ss:$8 sm:$0xf] %vm74, %v73
    %s77 = scalar_lea.vmem [#allocation0], 4
    %78 = vst.msk [vmem:[%s77] ss:$8 sm:$0xf0] %vm74, %v73
    %s79 = scalar_lea.vmem %s0, 4
    %v80 = vld.sshfl [vmem:[%s79] sm:$0xff pattern:$0xb3a29180]
    %81 = vrot.lane.b32.xlu0 %v80, 64
    %v82 = vpop.permute.xlu0 %81
    %vm83 = vcmask 130048
    %s84 = scalar_lea.vmem [#allocation0], 68
    %85 = vst.msk [vmem:[%s84] ss:$8 sm:$0xf] %vm83, %v82
    %s86 = scalar_lea.vmem [#allocation0], 68
    %87 = vst.msk [vmem:[%s86] ss:$8 sm:$0xf0] %vm83, %v82
    %v88 = vld.sshfl [vmem:[%s0] sm:$0xff pattern:$0xb3a29180]
    %89 = vrot.lane.b32.xlu0 %v88, 48
    %v90 = vpop.permute.xlu0 %89
    %vm91 = vcmask 130048
    %s92 = scalar_lea.vmem [#allocation0], 5
    %93 = vst.msk [vmem:[%s92] ss:$8 sm:$0xf] %vm91, %v90
    %s94 = scalar_lea.vmem [#allocation0], 5
    %95 = vst.msk [vmem:[%s94] ss:$8 sm:$0xf0] %vm91, %v90
    %s96 = scalar_lea.vmem %s0, 4
    %v97 = vld.sshfl [vmem:[%s96] sm:$0xff pattern:$0xb3a29180]
    %98 = vrot.lane.b32.xlu0 %v97, 48
    %v99 = vpop.permute.xlu0 %98
    %vm100 = vcmask 130048
    %s101 = scalar_lea.vmem [#allocation0], 69
    %102 = vst.msk [vmem:[%s101] ss:$8 sm:$0xf] %vm100, %v99
    %s103 = scalar_lea.vmem [#allocation0], 69
    %104 = vst.msk [vmem:[%s103] ss:$8 sm:$0xf0] %vm100, %v99
    %v105 = vld.sshfl [vmem:[%s0] sm:$0xff pattern:$0xb3a29180]
    %106 = vrot.lane.b32.xlu0 %v105, 32
    %v107 = vpop.permute.xlu0 %106
    %vm108 = vcmask 130048
    %s109 = scalar_lea.vmem [#allocation0], 6
    %110 = vst.msk [vmem:[%s109] ss:$8 sm:$0xf] %vm108, %v107
    %s111 = scalar_lea.vmem [#allocation0], 6
    %112 = vst.msk [vmem:[%s111] ss:$8 sm:$0xf0] %vm108, %v107
    %s113 = scalar_lea.vmem %s0, 4
    %v114 = vld.sshfl [vmem:[%s113] sm:$0xff pattern:$0xb3a29180]
    %115 = vrot.lane.b32.xlu0 %v114, 32
    %v116 = vpop.permute.xlu0 %115
    %vm117 = vcmask 130048
    %s118 = scalar_lea.vmem [#allocation0], 70
    %119 = vst.msk [vmem:[%s118] ss:$8 sm:$0xf] %vm117, %v116
    %s120 = scalar_lea.vmem [#allocation0], 70
    %121 = vst.msk [vmem:[%s120] ss:$8 sm:$0xf0] %vm117, %v116
    %v122 = vld.sshfl [vmem:[%s0] sm:$0xff pattern:$0xb3a29180]
    %123 = vrot.lane.b32.xlu0 %v122, 16
    %v124 = vpop.permute.xlu0 %123
    %vm125 = vcmask 130048
    %s126 = scalar_lea.vmem [#allocation0], 7
    %127 = vst.msk [vmem:[%s126] ss:$8 sm:$0xf] %vm125, %v124
    %s128 = scalar_lea.vmem [#allocation0], 7
    %129 = vst.msk [vmem:[%s128] ss:$8 sm:$0xf0] %vm125, %v124
    %s130 = scalar_lea.vmem %s0, 4
    %v131 = vld.sshfl [vmem:[%s130] sm:$0xff pattern:$0xb3a29180]
    %132 = vrot.lane.b32.xlu0 %v131, 16
    %v133 = vpop.permute.xlu0 %132
    %vm134 = vcmask 130048
    %s135 = scalar_lea.vmem [#allocation0], 71
    %136 = vst.msk [vmem:[%s135] ss:$8 sm:$0xf] %vm134, %v133
    %s137 = scalar_lea.vmem [#allocation0], 71
    %138 = vst.msk [vmem:[%s137] ss:$8 sm:$0xf0] %vm134, %v133
    %s140 = ssub.s32 2048, 2048
    %141 = vsyncadd [#allocation1], %s140
    %s143 = sshll.u32 [#allocation0], 4
    %s144 = int_to_ptr.vmem [resolvable:$true] %s143
    %146 = dma.vmem_to_hbm [thread:$0]  %s144, 2048, %s1, [#allocation1]
    %147 = dma.done [#allocation1], 2048
    %148 = vsyncpa [#allocation1], 1

// kernel: single_head_2d_attention.1
$region0: #{single_head_2d_attention.1}
  #allocation0 [shape = 'u32[]', space=smem, size = 0x4, offset = 0x4, fixed_abs, tag = 'smem constant byte address 0x4 - core index']
  #allocation1 [shape = 'u32[144,128]{1,0:T(1,128)}', space=vmem, size = 0x12000, scoped, tag = 'internal scratch']
  %s0 = inlined_call_operand.vmem [shape: f32[4,8,256], index: 0, kind: input, shape index: {}]
  %s1 = inlined_call_operand.vmem [shape: f32[8,256], index: 1, kind: input, shape index: {}]
  %s2 = inlined_call_operand.vmem [shape: f32[8,256], index: 2, kind: input, shape index: {}]
  %s3 = inlined_call_operand.vmem [shape: f32[256,256], index: 3, kind: input, shape index: {}]
  %s4 = inlined_call_operand.vmem [shape: f32[256,256], index: 4, kind: input, shape index: {}]
  %s5 = inlined_call_operand.vmem [shape: f32[4,2,256], index: 5, kind: output, shape index: {0}]
  %s6 = inlined_call_operand.vmem [shape: f32[4,8,256], index: 6, kind: output, shape index: {1}]
  %7 = xla_tuple %s5, %s6
  %s8 = sld [smem:[#allocation0]]
  $region61: #{single_head_2d_attention.1} parent=0
    _
  %s10 = ssub.s32 1, %s8
  %s11 = scalar_select 0, %s10, %s8
  loop: start=0, step=1, limit=6
  $region2: #{single_head_2d_attention.1} parent=0 // loop_pre_header
    _
  $region3: #{single_head_2d_attention.1} parent=0 // loop_header
    %s13 = sphi 0, %s17
    %p14 = scmp.ge.s32.totalorder %s13, 6
    %s23 = sphi 0, %s25
    %s26 = sphi 0, %s23
    %s27 = sphi 0, %s26
    %s43 = sphi 0, %s27
    %s47 = sphi 0, %s47
    %s49 = sphi 0, %s47
    %s50 = sphi 0, %s49
    %s64 = sphi 0, %s50
    %s68 = sphi 0, %s68
    %s70 = sphi 0, %s68
    %s71 = sphi 0, %s70
    %s85 = sphi 0, %s71
    %s89 = sphi 0, %s89
    %s91 = sphi 0, %s89
    %s92 = sphi 0, %s91
    %s106 = sphi 0, %s92
    %s110 = sphi 0, %s110
    %s112 = sphi 0, %s110
    %s113 = sphi 0, %s112
    %s127 = sphi 0, %s113
    %s133 = sphi 0, %s135
    %s136 = sphi 0, %s133
    %s137 = sphi 0, %s136
    %s153 = sphi 0, %s137
    %s159 = sphi 0, %s161
    %s162 = sphi 0, %s159
    %s163 = sphi 0, %s162
    %s179 = sphi 0, %s163
  $region4: #{single_head_2d_attention.1} parent=0 // loop_header_branch
    %16 = sbr.rel (%p14) target = $region8
  $region5: #{single_head_2d_attention.1} parent=0 // loop_body
    %s18 = ssub.s32 %s13, 1
    %s19 = ssub.s32 %s13, 2
    %s20 = sadd.s32 %s13, 1
    %s21 = ssub.s32 %s13, %s20
    %p22 = scmp.eq.s32.totalorder %s21, 0
    %s24 = sadd.s32 %s23, 1
    %s25 = scalar_select %p22, %s23, %s24
    %p28 = pneg %p22
    %p29 = scmp.eq.s32.totalorder %s13, 3
    %p30 = por %p28, %p29
    %p31 = scmp.ne.s32.totalorder %s23, %s26
    %p32 = scmp.eq.s32.totalorder %s13, 0
    %p33 = por %p31, %p32
    %p34 = scmp.ne.s32.totalorder %s23, %s26
    %p35 = scmp.eq.s32.totalorder %s18, 3
    %p36 = por %p34, %p35
    %p37 = scmp.ne.s32.totalorder %s26, %s27
    %p38 = scmp.eq.s32.totalorder %s18, 0
    %p39 = por %p37, %p38
    %p40 = scmp.ne.s32.totalorder %s26, %s27
    %p41 = scmp.eq.s32.totalorder %s19, 3
    %p42 = por %p40, %p41
    %p44 = scmp.ne.s32.totalorder %s27, %s43
    %p45 = scmp.eq.s32.totalorder %s19, 0
    %p46 = por %p44, %p45
    %s48 = sadd.s32 %s47, 1
    %p51 = scmp.eq.s32.totalorder %s13, 3
    %p52 = scmp.ne.s32.totalorder %s47, %s49
    %p53 = scmp.eq.s32.totalorder %s13, 0
    %p54 = por %p52, %p53
    %p55 = scmp.ne.s32.totalorder %s47, %s49
    %p56 = scmp.eq.s32.totalorder %s18, 3
    %p57 = por %p55, %p56
    %p58 = scmp.ne.s32.totalorder %s49, %s50
    %p59 = scmp.eq.s32.totalorder %s18, 0
    %p60 = por %p58, %p59
    %p61 = scmp.ne.s32.totalorder %s49, %s50
    %p62 = scmp.eq.s32.totalorder %s19, 3
    %p63 = por %p61, %p62
    %p65 = scmp.ne.s32.totalorder %s50, %s64
    %p66 = scmp.eq.s32.totalorder %s19, 0
    %p67 = por %p65, %p66
    %s69 = sadd.s32 %s68, 1
    %p72 = scmp.eq.s32.totalorder %s13, 3
    %p73 = scmp.ne.s32.totalorder %s68, %s70
    %p74 = scmp.eq.s32.totalorder %s13, 0
    %p75 = por %p73, %p74
    %p76 = scmp.ne.s32.totalorder %s68, %s70
    %p77 = scmp.eq.s32.totalorder %s18, 3
    %p78 = por %p76, %p77
    %p79 = scmp.ne.s32.totalorder %s70, %s71
    %p80 = scmp.eq.s32.totalorder %s18, 0
    %p81 = por %p79, %p80
    %p82 = scmp.ne.s32.totalorder %s70, %s71
    %p83 = scmp.eq.s32.totalorder %s19, 3
    %p84 = por %p82, %p83
    %p86 = scmp.ne.s32.totalorder %s71, %s85
    %p87 = scmp.eq.s32.totalorder %s19, 0
    %p88 = por %p86, %p87
    %s90 = sadd.s32 %s89, 1
    %p93 = scmp.eq.s32.totalorder %s13, 3
    %p94 = scmp.ne.s32.totalorder %s89, %s91
    %p95 = scmp.eq.s32.totalorder %s13, 0
    %p96 = por %p94, %p95
    %p97 = scmp.ne.s32.totalorder %s89, %s91
    %p98 = scmp.eq.s32.totalorder %s18, 3
    %p99 = por %p97, %p98
    %p100 = scmp.ne.s32.totalorder %s91, %s92
    %p101 = scmp.eq.s32.totalorder %s18, 0
    %p102 = por %p100, %p101
    %p103 = scmp.ne.s32.totalorder %s91, %s92
    %p104 = scmp.eq.s32.totalorder %s19, 3
    %p105 = por %p103, %p104
    %p107 = scmp.ne.s32.totalorder %s92, %s106
    %p108 = scmp.eq.s32.totalorder %s19, 0
    %p109 = por %p107, %p108
    %s111 = sadd.s32 %s110, 1
    %p114 = scmp.eq.s32.totalorder %s13, 3
    %p115 = scmp.ne.s32.totalorder %s110, %s112
    %p116 = scmp.eq.s32.totalorder %s13, 0
    %p117 = por %p115, %p116
    %p118 = scmp.ne.s32.totalorder %s110, %s112
    %p119 = scmp.eq.s32.totalorder %s18, 3
    %p120 = por %p118, %p119
    %p121 = scmp.ne.s32.totalorder %s112, %s113
    %p122 = scmp.eq.s32.totalorder %s18, 0
    %p123 = por %p121, %p122
    %p124 = scmp.ne.s32.totalorder %s112, %s113
    %p125 = scmp.eq.s32.totalorder %s19, 3
    %p126 = por %p124, %p125
    %p128 = scmp.ne.s32.totalorder %s113, %s127
    %p129 = scmp.eq.s32.totalorder %s19, 0
    %p130 = por %p128, %p129
    %s131 = ssub.s32 %s13, %s20
    %p132 = scmp.eq.s32.totalorder %s131, 0
    %s134 = sadd.s32 %s133, 1
    %s135 = scalar_select %p132, %s133, %s134
    %p138 = pneg %p132
    %p139 = scmp.eq.s32.totalorder %s13, 3
    %p140 = por %p138, %p139
    %p141 = scmp.ne.s32.totalorder %s133, %s136
    %p142 = scmp.eq.s32.totalorder %s13, 0
    %p143 = por %p141, %p142
    %p144 = scmp.ne.s32.totalorder %s133, %s136
    %p145 = scmp.eq.s32.totalorder %s18, 3
    %p146 = por %p144, %p145
    %p147 = scmp.ne.s32.totalorder %s136, %s137
    %p148 = scmp.eq.s32.totalorder %s18, 0
    %p149 = por %p147, %p148
    %p150 = scmp.ne.s32.totalorder %s136, %s137
    %p151 = scmp.eq.s32.totalorder %s19, 3
    %p152 = por %p150, %p151
    %p154 = scmp.ne.s32.totalorder %s137, %s153
    %p155 = scmp.eq.s32.totalorder %s19, 0
    %p156 = por %p154, %p155
    %s157 = ssub.s32 %s13, %s20
    %p158 = scmp.eq.s32.totalorder %s157, 0
    %s160 = sadd.s32 %s159, 1
    %s161 = scalar_select %p158, %s159, %s160
    %p164 = pneg %p158
    %p165 = scmp.eq.s32.totalorder %s13, 3
    %p166 = por %p164, %p165
    %p167 = scmp.ne.s32.totalorder %s159, %s162
    %p168 = scmp.eq.s32.totalorder %s13, 0
    %p169 = por %p167, %p168
    %p170 = scmp.ne.s32.totalorder %s159, %s162
    %p171 = scmp.eq.s32.totalorder %s18, 3
    %p172 = por %p170, %p171
    %p173 = scmp.ne.s32.totalorder %s162, %s163
    %p174 = scmp.eq.s32.totalorder %s18, 0
    %p175 = por %p173, %p174
    %p176 = scmp.ne.s32.totalorder %s162, %s163
    %p177 = scmp.eq.s32.totalorder %s19, 3
    %p178 = por %p176, %p177
    %p180 = scmp.ne.s32.totalorder %s163, %s179
    %p181 = scmp.eq.s32.totalorder %s19, 0
    %p182 = por %p180, %p181
    %p183 = scmp.le.s32.totalorder 1, %s13
    %p184 = scmp.lt.s32.totalorder %s13, 5
    %p185 = pnand %p183, %p184
    %p186 = pneg %p185
    // Predicated region
    $region9: #{single_head_2d_attention.1} parent=5 // pred_check
      _
    $region10: #{single_head_2d_attention.1} parent=5 // pred_check_branch
      %188 = sbr.rel (%p185) target = $region12
    $region11: #{single_head_2d_attention.1} parent=5 // pred_region
      %s189 = ssub.s32 %s13, 1
      // Predicated region
      $region13: #{single_head_2d_attention.1} parent=11 // pred_check
        %p190 = pneg %p60
      $region14: #{single_head_2d_attention.1} parent=11 // pred_check_branch
        %192 = sbr.rel (%p190) target = $region16
      $region15: #{single_head_2d_attention.1} parent=11 // pred_region
        _
      $region16: #{single_head_2d_attention.1} parent=11 // pred_fallthru
        _
      // Predicated region
      $region17: #{single_head_2d_attention.1} parent=11 // pred_check
        %p193 = pneg %p81
      $region18: #{single_head_2d_attention.1} parent=11 // pred_check_branch
        %195 = sbr.rel (%p193) target = $region20
      $region19: #{single_head_2d_attention.1} parent=11 // pred_region
        _
      $region20: #{single_head_2d_attention.1} parent=11 // pred_fallthru
        _
      // Predicated region
      $region21: #{single_head_2d_attention.1} parent=11 // pred_check
        %p196 = pneg %p102
      $region22: #{single_head_2d_attention.1} parent=11 // pred_check_branch
        %198 = sbr.rel (%p196) target = $region24
      $region23: #{single_head_2d_attention.1} parent=11 // pred_region
        _
      $region24: #{single_head_2d_attention.1} parent=11 // pred_fallthru
        _
      // Predicated region
      $region25: #{single_head_2d_attention.1} parent=11 // pred_check
        %p199 = pneg %p123
      $region26: #{single_head_2d_attention.1} parent=11 // pred_check_branch
        %201 = sbr.rel (%p199) target = $region28
      $region27: #{single_head_2d_attention.1} parent=11 // pred_region
        _
      $region28: #{single_head_2d_attention.1} parent=11 // pred_fallthru
        _
    $region12: #{single_head_2d_attention.1} parent=5 // pred_fallthru
      _
    %p202 = scmp.lt.s32.totalorder %s13, 4
    // Predicated region
    $region29: #{single_head_2d_attention.1} parent=5 // pred_check
      %p203 = pneg %p202
    $region30: #{single_head_2d_attention.1} parent=5 // pred_check_branch
      %205 = sbr.rel (%p203) target = $region32
    $region31: #{single_head_2d_attention.1} parent=5 // pred_region
      // Predicated region
      $region33: #{single_head_2d_attention.1} parent=31 // pred_check
        %p206 = pneg %p33
      $region34: #{single_head_2d_attention.1} parent=31 // pred_check_branch
        %208 = sbr.rel (%p206) target = $region36
      $region35: #{single_head_2d_attention.1} parent=31 // pred_region
        %p209 = scmp.lt.s32.totalorder %s13, 3
        %s210 = scalar_select %p209, %s13, 3
        %s211 = smul.addr %s210, 2
        %s212 = smul.addr %s211, 8
        %s213 = scalar_lea.vmem %s0, %s212
      $region36: #{single_head_2d_attention.1} parent=31 // pred_fallthru
        _
    $region32: #{single_head_2d_attention.1} parent=5 // pred_fallthru
      _
    %p214 = scmp.le.s32.totalorder 1, %s13
    %p215 = scmp.lt.s32.totalorder %s13, 5
    %p216 = pnand %p214, %p215
    %p217 = pneg %p216
    // Predicated region
    $region37: #{single_head_2d_attention.1} parent=5 // pred_check
      _
    $region38: #{single_head_2d_attention.1} parent=5 // pred_check_branch
      %219 = sbr.rel (%p216) target = $region40
    $region39: #{single_head_2d_attention.1} parent=5 // pred_region
      %s220 = ssub.s32 %s13, 1
      %p221 = scmp.lt.s32.totalorder %s18, 3
      %s222 = scalar_select %p221, %s18, 3
      %s223 = smul.addr %s222, 2
      %s224 = smul.addr %s223, 8
      %s225 = scalar_lea.vmem %s0, %s224
      %p226 = pneg %p39
      %p227 = pneg %p36
      %p228 = pneg %p60
      %p229 = pneg %p57
      %p230 = pneg %p81
      %p231 = pneg %p78
      %p232 = pneg %p102
      %p233 = pneg %p99
      %p234 = pneg %p123
      %p235 = pneg %p120
      %p236 = pneg %p149
      %p237 = pneg %p146
      %p238 = scmp.lt.s32.totalorder %s18, 3
      %s239 = scalar_select %p238, %s18, 3
      %s240 = smul.addr %s239, 2
      %s241 = smul.addr %s240, 2
      %s242 = scalar_lea.vmem %s5, %s241
      %p243 = pneg %p175
      %p244 = pneg %p172
      %p245 = scmp.lt.s32.totalorder %s18, 3
      %s246 = scalar_select %p245, %s18, 3
      %s247 = smul.addr %s246, 2
      %s248 = smul.addr %s247, 8
      %s249 = scalar_lea.vmem %s6, %s248
      %p250 = scmp.lt.s32.totalorder %s18, 3
      %s251 = scalar_select %p250, %s18, 3
      %s252 = smul.addr %s251, 2
      %s253 = smul.addr %s252, 8
      %s254 = scalar_lea.vmem %s0, %s253
      %p255 = scmp.lt.s32.totalorder %s18, 3
      %s256 = scalar_select %p255, %s18, 3
      %s257 = smul.addr %s256, 2
      %s258 = smul.addr %s257, 2
      %s259 = scalar_lea.vmem %s5, %s258
      %p260 = scmp.lt.s32.totalorder %s18, 3
      %s261 = scalar_select %p260, %s18, 3
      %s262 = smul.addr %s261, 2
      %s263 = smul.addr %s262, 8
      %s264 = scalar_lea.vmem %s6, %s263
      %v265 = vld [vmem:[%s254] sm:$0xff]
      %v266 = vld [vmem:[%s254 + $0x8] sm:$0xff]
      %v267 = vld [vmem:[%s1] sm:$0xff]
      %v268 = vld [vmem:[%s1 + $0x8] sm:$0xff]
      %v269 = vld [vmem:[%s2] sm:$0xff]
      %v270 = vld [vmem:[%s2 + $0x8] sm:$0xff]
      %v271 = vld [vmem:[%s3] sm:$0xff]
      %v272 = vld [vmem:[%s3 + $0x8] sm:$0xff]
      %v273 = vld [vmem:[%s3 + $0x10] sm:$0xff]
      %v274 = vld [vmem:[%s3 + $0x18] sm:$0xff]
      %v275 = vld [vmem:[%s3 + $0x20] sm:$0xff]
      %v276 = vld [vmem:[%s3 + $0x28] sm:$0xff]
      %v277 = vld [vmem:[%s3 + $0x30] sm:$0xff]
      %v278 = vld [vmem:[%s3 + $0x38] sm:$0xff]
      %v279 = vld [vmem:[%s3 + $0x40] sm:$0xff]
      %v280 = vld [vmem:[%s3 + $0x48] sm:$0xff]
      %v281 = vld [vmem:[%s3 + $0x50] sm:$0xff]
      %v282 = vld [vmem:[%s3 + $0x58] sm:$0xff]
      %v283 = vld [vmem:[%s3 + $0x60] sm:$0xff]
      %v284 = vld [vmem:[%s3 + $0x68] sm:$0xff]
      %v285 = vld [vmem:[%s3 + $0x70] sm:$0xff]
      %v286 = vld [vmem:[%s3 + $0x78] sm:$0xff]
      %v287 = vld [vmem:[%s3 + $0x80] sm:$0xff]
      %v288 = vld [vmem:[%s3 + $0x88] sm:$0xff]
      %v289 = vld [vmem:[%s3 + $0x90] sm:$0xff]
      %v290 = vld [vmem:[%s3 + $0x98] sm:$0xff]
      %v291 = vld [vmem:[%s3 + $0xa0] sm:$0xff]
      %v292 = vld [vmem:[%s3 + $0xa8] sm:$0xff]
      %v293 = vld [vmem:[%s3 + $0xb0] sm:$0xff]
      %v294 = vld [vmem:[%s3 + $0xb8] sm:$0xff]
      %v295 = vld [vmem:[%s3 + $0xc0] sm:$0xff]
      %v296 = vld [vmem:[%s3 + $0xc8] sm:$0xff]
      %v297 = vld [vmem:[%s3 + $0xd0] sm:$0xff]
      %v298 = vld [vmem:[%s3 + $0xd8] sm:$0xff]
      %v299 = vld [vmem:[%s3 + $0xe0] sm:$0xff]
      %v300 = vld [vmem:[%s3 + $0xe8] sm:$0xff]
      %v301 = vld [vmem:[%s3 + $0xf0] sm:$0xff]
      %v302 = vld [vmem:[%s3 + $0xf8] sm:$0xff]
      %v303 = vld [vmem:[%s3 + $0x100] sm:$0xff]
      %v304 = vld [vmem:[%s3 + $0x108] sm:$0xff]
      %v305 = vld [vmem:[%s3 + $0x110] sm:$0xff]
      %v306 = vld [vmem:[%s3 + $0x118] sm:$0xff]
      %v307 = vld [vmem:[%s3 + $0x120] sm:$0xff]
      %v308 = vld [vmem:[%s3 + $0x128] sm:$0xff]
      %v309 = vld [vmem:[%s3 + $0x130] sm:$0xff]
      %v310 = vld [vmem:[%s3 + $0x138] sm:$0xff]
      %v311 = vld [vmem:[%s3 + $0x140] sm:$0xff]
      %v312 = vld [vmem:[%s3 + $0x148] sm:$0xff]
      %v313 = vld [vmem:[%s3 + $0x150] sm:$0xff]
      %v314 = vld [vmem:[%s3 + $0x158] sm:$0xff]
      %v315 = vld [vmem:[%s3 + $0x160] sm:$0xff]
      %v316 = vld [vmem:[%s3 + $0x168] sm:$0xff]
      %v317 = vld [vmem:[%s3 + $0x170] sm:$0xff]
      %v318 = vld [vmem:[%s3 + $0x178] sm:$0xff]
      %v319 = vld [vmem:[%s3 + $0x180] sm:$0xff]
      %v320 = vld [vmem:[%s3 + $0x188] sm:$0xff]
      %v321 = vld [vmem:[%s3 + $0x190] sm:$0xff]
      %v322 = vld [vmem:[%s3 + $0x198] sm:$0xff]
      %v323 = vld [vmem:[%s3 + $0x1a0] sm:$0xff]
      %v324 = vld [vmem:[%s3 + $0x1a8] sm:$0xff]
      %v325 = vld [vmem:[%s3 + $0x1b0] sm:$0xff]
      %v326 = vld [vmem:[%s3 + $0x1b8] sm:$0xff]
      %v327 = vld [vmem:[%s3 + $0x1c0] sm:$0xff]
      %v328 = vld [vmem:[%s3 + $0x1c8] sm:$0xff]
      %v329 = vld [vmem:[%s3 + $0x1d0] sm:$0xff]
      %v330 = vld [vmem:[%s3 + $0x1d8] sm:$0xff]
      %v331 = vld [vmem:[%s3 + $0x1e0] sm:$0xff]
      %v332 = vld [vmem:[%s3 + $0x1e8] sm:$0xff]
      %v333 = vld [vmem:[%s3 + $0x1f0] sm:$0xff]
      %v334 = vld [vmem:[%s3 + $0x1f8] sm:$0xff]
      %v335 = vld [vmem:[%s4] sm:$0xff]
      %v336 = vld [vmem:[%s4 + $0x8] sm:$0xff]
      %v337 = vld [vmem:[%s4 + $0x10] sm:$0xff]
      %v338 = vld [vmem:[%s4 + $0x18] sm:$0xff]
      %v339 = vld [vmem:[%s4 + $0x20] sm:$0xff]
      %v340 = vld [vmem:[%s4 + $0x28] sm:$0xff]
      %v341 = vld [vmem:[%s4 + $0x30] sm:$0xff]
      %v342 = vld [vmem:[%s4 + $0x38] sm:$0xff]
      %v343 = vld [vmem:[%s4 + $0x40] sm:$0xff]
      %v344 = vld [vmem:[%s4 + $0x48] sm:$0xff]
      %v345 = vld [vmem:[%s4 + $0x50] sm:$0xff]
      %v346 = vld [vmem:[%s4 + $0x58] sm:$0xff]
      %v347 = vld [vmem:[%s4 + $0x60] sm:$0xff]
      %v348 = vld [vmem:[%s4 + $0x68] sm:$0xff]
      %v349 = vld [vmem:[%s4 + $0x70] sm:$0xff]
      %v350 = vld [vmem:[%s4 + $0x78] sm:$0xff]
      %v351 = vld [vmem:[%s4 + $0x80] sm:$0xff]
      %v352 = vld [vmem:[%s4 + $0x88] sm:$0xff]
      %v353 = vld [vmem:[%s4 + $0x90] sm:$0xff]
      %v354 = vld [vmem:[%s4 + $0x98] sm:$0xff]
      %v355 = vld [vmem:[%s4 + $0xa0] sm:$0xff]
      %v356 = vld [vmem:[%s4 + $0xa8] sm:$0xff]
      %v357 = vld [vmem:[%s4 + $0xb0] sm:$0xff]
      %v358 = vld [vmem:[%s4 + $0xb8] sm:$0xff]
      %v359 = vld [vmem:[%s4 + $0xc0] sm:$0xff]
      %v360 = vld [vmem:[%s4 + $0xc8] sm:$0xff]
      %v361 = vld [vmem:[%s4 + $0xd0] sm:$0xff]
      %v362 = vld [vmem:[%s4 + $0xd8] sm:$0xff]
      %v363 = vld [vmem:[%s4 + $0xe0] sm:$0xff]
      %v364 = vld [vmem:[%s4 + $0xe8] sm:$0xff]
      %v365 = vld [vmem:[%s4 + $0xf0] sm:$0xff]
      %v366 = vld [vmem:[%s4 + $0xf8] sm:$0xff]
      %v367 = vld [vmem:[%s4 + $0x100] sm:$0xff]
      %v368 = vld [vmem:[%s4 + $0x108] sm:$0xff]
      %v369 = vld [vmem:[%s4 + $0x110] sm:$0xff]
      %v370 = vld [vmem:[%s4 + $0x118] sm:$0xff]
      %v371 = vld [vmem:[%s4 + $0x120] sm:$0xff]
      %v372 = vld [vmem:[%s4 + $0x128] sm:$0xff]
      %v373 = vld [vmem:[%s4 + $0x130] sm:$0xff]
      %v374 = vld [vmem:[%s4 + $0x138] sm:$0xff]
      %v375 = vld [vmem:[%s4 + $0x140] sm:$0xff]
      %v376 = vld [vmem:[%s4 + $0x148] sm:$0xff]
      %v377 = vld [vmem:[%s4 + $0x150] sm:$0xff]
      %v378 = vld [vmem:[%s4 + $0x158] sm:$0xff]
      %v379 = vld [vmem:[%s4 + $0x160] sm:$0xff]
      %v380 = vld [vmem:[%s4 + $0x168] sm:$0xff]
      %v381 = vld [vmem:[%s4 + $0x170] sm:$0xff]
      %v382 = vld [vmem:[%s4 + $0x178] sm:$0xff]
      %v383 = vld [vmem:[%s4 + $0x180] sm:$0xff]
      %v384 = vld [vmem:[%s4 + $0x188] sm:$0xff]
      %v385 = vld [vmem:[%s4 + $0x190] sm:$0xff]
      %v386 = vld [vmem:[%s4 + $0x198] sm:$0xff]
      %v387 = vld [vmem:[%s4 + $0x1a0] sm:$0xff]
      %v388 = vld [vmem:[%s4 + $0x1a8] sm:$0xff]
      %v389 = vld [vmem:[%s4 + $0x1b0] sm:$0xff]
      %v390 = vld [vmem:[%s4 + $0x1b8] sm:$0xff]
      %v391 = vld [vmem:[%s4 + $0x1c0] sm:$0xff]
      %v392 = vld [vmem:[%s4 + $0x1c8] sm:$0xff]
      %v393 = vld [vmem:[%s4 + $0x1d0] sm:$0xff]
      %v394 = vld [vmem:[%s4 + $0x1d8] sm:$0xff]
      %v395 = vld [vmem:[%s4 + $0x1e0] sm:$0xff]
      %v396 = vld [vmem:[%s4 + $0x1e8] sm:$0xff]
      %v397 = vld [vmem:[%s4 + $0x1f0] sm:$0xff]
      %v398 = vld [vmem:[%s4 + $0x1f8] sm:$0xff]
      %399 = vmatprep.subr.mxu0 %v272
      %400 = vmatpush1.msra.mxu0 %v271
      %401 = vmatprep.subr.mxu0 %v274
      %402 = vmatpush1.msra.mxu0 %v273
      %403 = vmatprep.subr.mxu0 %v276
      %404 = vmatpush1.msra.mxu0 %v275
      %405 = vmatprep.subr.mxu0 %v278
      %406 = vmatpush1.msra.mxu0 %v277
      %407 = vmatprep.subr.mxu0 %v280
      %408 = vmatpush1.msra.mxu0 %v279
      %409 = vmatprep.subr.mxu0 %v282
      %410 = vmatpush1.msra.mxu0 %v281
      %411 = vmatprep.subr.mxu0 %v284
      %412 = vmatpush1.msra.mxu0 %v283
      %413 = vmatprep.subr.mxu0 %v286
      %414 = vmatpush1.msra.mxu0 %v285
      %415 = vmatprep.subr.mxu0 %v288
      %416 = vmatpush1.msra.mxu0 %v287
      %417 = vmatprep.subr.mxu0 %v290
      %418 = vmatpush1.msra.mxu0 %v289
      %419 = vmatprep.subr.mxu0 %v292
      %420 = vmatpush1.msra.mxu0 %v291
      %421 = vmatprep.subr.mxu0 %v294
      %422 = vmatpush1.msra.mxu0 %v293
      %423 = vmatprep.subr.mxu0 %v296
      %424 = vmatpush1.msra.mxu0 %v295
      %425 = vmatprep.subr.mxu0 %v298
      %426 = vmatpush1.msra.mxu0 %v297
      %427 = vmatprep.subr.mxu0 %v300
      %428 = vmatpush1.msra.mxu0 %v299
      %429 = vmatprep.subr.mxu0 %v302
      %430 = vmatpush1.msra.mxu0 %v301
      %431 = vmatprep.subr.mxu0 %v304
      %432 = vmatpush1.msra.mxu0 %v303
      %433 = vmatprep.subr.mxu0 %v306
      %434 = vmatpush1.msra.mxu0 %v305
      %435 = vmatprep.subr.mxu0 %v308
      %436 = vmatpush1.msra.mxu0 %v307
      %437 = vmatprep.subr.mxu0 %v310
      %438 = vmatpush1.msra.mxu0 %v309
      %439 = vmatprep.subr.mxu0 %v312
      %440 = vmatpush1.msra.mxu0 %v311
      %441 = vmatprep.subr.mxu0 %v314
      %442 = vmatpush1.msra.mxu0 %v313
      %443 = vmatprep.subr.mxu0 %v316
      %444 = vmatpush1.msra.mxu0 %v315
      %445 = vmatprep.subr.mxu0 %v318
      %446 = vmatpush1.msra.mxu0 %v317
      %447 = vmatprep.subr.mxu0 %v320
      %448 = vmatpush1.msra.mxu0 %v319
      %449 = vmatprep.subr.mxu0 %v322
      %450 = vmatpush1.msra.mxu0 %v321
      %451 = vmatprep.subr.mxu0 %v324
      %452 = vmatpush1.msra.mxu0 %v323
      %453 = vmatprep.subr.mxu0 %v326
      %454 = vmatpush1.msra.mxu0 %v325
      %455 = vmatprep.subr.mxu0 %v328
      %456 = vmatpush1.msra.mxu0 %v327
      %457 = vmatprep.subr.mxu0 %v330
      %458 = vmatpush1.msra.mxu0 %v329
      %459 = vmatprep.subr.mxu0 %v332
      %460 = vmatpush1.msra.mxu0 %v331
      %461 = vmatprep.subr.mxu0 %v334
      %462 = vmatpush1.msra.mxu0 %v333
      %463 = vmatprep.mubr.f32.mxu0 %v266
      %464 = vmatmul.mubr.f32.gmra.mrb[0].mxu0 %v265
      %v465 = vpop.f32.mrb[0].mxu0
      %v466 = vadd.f32 0.0, %v465
      %v467 = vpop.f32.mrb[0].mxu0
      %v468 = vadd.f32 0.0, %v467
      %469 = vdwg.mxu0
      %470 = vmatprep.subr.mxu0 %v336
      %471 = vmatpush1.msra.mxu0 %v335
      %472 = vmatprep.subr.mxu0 %v338
      %473 = vmatpush1.msra.mxu0 %v337
      %474 = vmatprep.subr.mxu0 %v340
      %475 = vmatpush1.msra.mxu0 %v339
      %476 = vmatprep.subr.mxu0 %v342
      %477 = vmatpush1.msra.mxu0 %v341
      %478 = vmatprep.subr.mxu0 %v344
      %479 = vmatpush1.msra.mxu0 %v343
      %480 = vmatprep.subr.mxu0 %v346
      %481 = vmatpush1.msra.mxu0 %v345
      %482 = vmatprep.subr.mxu0 %v348
      %483 = vmatpush1.msra.mxu0 %v347
      %484 = vmatprep.subr.mxu0 %v350
      %485 = vmatpush1.msra.mxu0 %v349
      %486 = vmatprep.subr.mxu0 %v352
      %487 = vmatpush1.msra.mxu0 %v351
      %488 = vmatprep.subr.mxu0 %v354
      %489 = vmatpush1.msra.mxu0 %v353
      %490 = vmatprep.subr.mxu0 %v356
      %491 = vmatpush1.msra.mxu0 %v355
      %492 = vmatprep.subr.mxu0 %v358
      %493 = vmatpush1.msra.mxu0 %v357
      %494 = vmatprep.subr.mxu0 %v360
      %495 = vmatpush1.msra.mxu0 %v359
      %496 = vmatprep.subr.mxu0 %v362
      %497 = vmatpush1.msra.mxu0 %v361
      %498 = vmatprep.subr.mxu0 %v364
      %499 = vmatpush1.msra.mxu0 %v363
      %500 = vmatprep.subr.mxu0 %v366
      %501 = vmatpush1.msra.mxu0 %v365
      %502 = vmatprep.subr.mxu0 %v368
      %503 = vmatpush1.msra.mxu0 %v367
      %504 = vmatprep.subr.mxu0 %v370
      %505 = vmatpush1.msra.mxu0 %v369
      %506 = vmatprep.subr.mxu0 %v372
      %507 = vmatpush1.msra.mxu0 %v371
      %508 = vmatprep.subr.mxu0 %v374
      %509 = vmatpush1.msra.mxu0 %v373
      %510 = vmatprep.subr.mxu0 %v376
      %511 = vmatpush1.msra.mxu0 %v375
      %512 = vmatprep.subr.mxu0 %v378
      %513 = vmatpush1.msra.mxu0 %v377
      %514 = vmatprep.subr.mxu0 %v380
      %515 = vmatpush1.msra.mxu0 %v379
      %516 = vmatprep.subr.mxu0 %v382
      %517 = vmatpush1.msra.mxu0 %v381
      %518 = vmatprep.subr.mxu0 %v384
      %519 = vmatpush1.msra.mxu0 %v383
      %520 = vmatprep.subr.mxu0 %v386
      %521 = vmatpush1.msra.mxu0 %v385
      %522 = vmatprep.subr.mxu0 %v388
      %523 = vmatpush1.msra.mxu0 %v387
      %524 = vmatprep.subr.mxu0 %v390
      %525 = vmatpush1.msra.mxu0 %v389
      %526 = vmatprep.subr.mxu0 %v392
      %527 = vmatpush1.msra.mxu0 %v391
      %528 = vmatprep.subr.mxu0 %v394
      %529 = vmatpush1.msra.mxu0 %v393
      %530 = vmatprep.subr.mxu0 %v396
      %531 = vmatpush1.msra.mxu0 %v395
      %532 = vmatprep.subr.mxu0 %v398
      %533 = vmatpush1.msra.mxu0 %v397
      %534 = vmatprep.mubr.f32.mxu0 %v266
      %535 = vmatmul.mubr.f32.gmra.mrb[0].mxu0 %v265
      %v536 = vpop.f32.mrb[0].mxu0
      %v537 = vadd.f32 0.0, %v536
      %v538 = vpop.f32.mrb[0].mxu0
      %v539 = vadd.f32 0.0, %v538
      %540 = vdwg.mxu0
      %541 = vmatprep.subr.mxu0 %v272
      %542 = vmatpush1.msra.mxu0 %v271
      %543 = vmatprep.subr.mxu0 %v274
      %544 = vmatpush1.msra.mxu0 %v273
      %545 = vmatprep.subr.mxu0 %v276
      %546 = vmatpush1.msra.mxu0 %v275
      %547 = vmatprep.subr.mxu0 %v278
      %548 = vmatpush1.msra.mxu0 %v277
      %549 = vmatprep.subr.mxu0 %v280
      %550 = vmatpush1.msra.mxu0 %v279
      %551 = vmatprep.subr.mxu0 %v282
      %552 = vmatpush1.msra.mxu0 %v281
      %553 = vmatprep.subr.mxu0 %v284
      %554 = vmatpush1.msra.mxu0 %v283
      %555 = vmatprep.subr.mxu0 %v286
      %556 = vmatpush1.msra.mxu0 %v285
      %557 = vmatprep.subr.mxu0 %v288
      %558 = vmatpush1.msra.mxu0 %v287
      %559 = vmatprep.subr.mxu0 %v290
      %560 = vmatpush1.msra.mxu0 %v289
      %561 = vmatprep.subr.mxu0 %v292
      %562 = vmatpush1.msra.mxu0 %v291
      %563 = vmatprep.subr.mxu0 %v294
      %564 = vmatpush1.msra.mxu0 %v293
      %565 = vmatprep.subr.mxu0 %v296
      %566 = vmatpush1.msra.mxu0 %v295
      %567 = vmatprep.subr.mxu0 %v298
      %568 = vmatpush1.msra.mxu0 %v297
      %569 = vmatprep.subr.mxu0 %v300
      %570 = vmatpush1.msra.mxu0 %v299
      %571 = vmatprep.subr.mxu0 %v302
      %572 = vmatpush1.msra.mxu0 %v301
      %573 = vmatprep.subr.mxu0 %v304
      %574 = vmatpush1.msra.mxu0 %v303
      %575 = vmatprep.subr.mxu0 %v306
      %576 = vmatpush1.msra.mxu0 %v305
      %577 = vmatprep.subr.mxu0 %v308
      %578 = vmatpush1.msra.mxu0 %v307
      %579 = vmatprep.subr.mxu0 %v310
      %580 = vmatpush1.msra.mxu0 %v309
      %581 = vmatprep.subr.mxu0 %v312
      %582 = vmatpush1.msra.mxu0 %v311
      %583 = vmatprep.subr.mxu0 %v314
      %584 = vmatpush1.msra.mxu0 %v313
      %585 = vmatprep.subr.mxu0 %v316
      %586 = vmatpush1.msra.mxu0 %v315
      %587 = vmatprep.subr.mxu0 %v318
      %588 = vmatpush1.msra.mxu0 %v317
      %589 = vmatprep.subr.mxu0 %v320
      %590 = vmatpush1.msra.mxu0 %v319
      %591 = vmatprep.subr.mxu0 %v322
      %592 = vmatpush1.msra.mxu0 %v321
      %593 = vmatprep.subr.mxu0 %v324
      %594 = vmatpush1.msra.mxu0 %v323
      %595 = vmatprep.subr.mxu0 %v326
      %596 = vmatpush1.msra.mxu0 %v325
      %597 = vmatprep.subr.mxu0 %v328
      %598 = vmatpush1.msra.mxu0 %v327
      %599 = vmatprep.subr.mxu0 %v330
      %600 = vmatpush1.msra.mxu0 %v329
      %601 = vmatprep.subr.mxu0 %v332
      %602 = vmatpush1.msra.mxu0 %v331
      %603 = vmatprep.subr.mxu0 %v334
      %604 = vmatpush1.msra.mxu0 %v333
      %605 = vmatprep.mubr.f32.mxu0 %v268
      %606 = vmatmul.mubr.f32.gmra.mrb[0].mxu0 %v267
      %v607 = vpop.f32.mrb[0].mxu0
      %v608 = vadd.f32 0.0, %v607
      %v609 = vpop.f32.mrb[0].mxu0
      %v610 = vadd.f32 0.0, %v609
      %611 = vdwg.mxu0
      %612 = vmatprep.subr.mxu0 %v336
      %613 = vmatpush1.msra.mxu0 %v335
      %614 = vmatprep.subr.mxu0 %v338
      %615 = vmatpush1.msra.mxu0 %v337
      %616 = vmatprep.subr.mxu0 %v340
      %617 = vmatpush1.msra.mxu0 %v339
      %618 = vmatprep.subr.mxu0 %v342
      %619 = vmatpush1.msra.mxu0 %v341
      %620 = vmatprep.subr.mxu0 %v344
      %621 = vmatpush1.msra.mxu0 %v343
      %622 = vmatprep.subr.mxu0 %v346
      %623 = vmatpush1.msra.mxu0 %v345
      %624 = vmatprep.subr.mxu0 %v348
      %625 = vmatpush1.msra.mxu0 %v347
      %626 = vmatprep.subr.mxu0 %v350
      %627 = vmatpush1.msra.mxu0 %v349
      %628 = vmatprep.subr.mxu0 %v352
      %629 = vmatpush1.msra.mxu0 %v351
      %630 = vmatprep.subr.mxu0 %v354
      %631 = vmatpush1.msra.mxu0 %v353
      %632 = vmatprep.subr.mxu0 %v356
      %633 = vmatpush1.msra.mxu0 %v355
      %634 = vmatprep.subr.mxu0 %v358
      %635 = vmatpush1.msra.mxu0 %v357
      %636 = vmatprep.subr.mxu0 %v360
      %637 = vmatpush1.msra.mxu0 %v359
      %638 = vmatprep.subr.mxu0 %v362
      %639 = vmatpush1.msra.mxu0 %v361
      %640 = vmatprep.subr.mxu0 %v364
      %641 = vmatpush1.msra.mxu0 %v363
      %642 = vmatprep.subr.mxu0 %v366
      %643 = vmatpush1.msra.mxu0 %v365
      %644 = vmatprep.subr.mxu0 %v368
      %645 = vmatpush1.msra.mxu0 %v367
      %646 = vmatprep.subr.mxu0 %v370
      %647 = vmatpush1.msra.mxu0 %v369
      %648 = vmatprep.subr.mxu0 %v372
      %649 = vmatpush1.msra.mxu0 %v371
      %650 = vmatprep.subr.mxu0 %v374
      %651 = vmatpush1.msra.mxu0 %v373
      %652 = vmatprep.subr.mxu0 %v376
      %653 = vmatpush1.msra.mxu0 %v375
      %654 = vmatprep.subr.mxu0 %v378
      %655 = vmatpush1.msra.mxu0 %v377
      %656 = vmatprep.subr.mxu0 %v380
      %657 = vmatpush1.msra.mxu0 %v379
      %658 = vmatprep.subr.mxu0 %v382
      %659 = vmatpush1.msra.mxu0 %v381
      %660 = vmatprep.subr.mxu0 %v384
      %661 = vmatpush1.msra.mxu0 %v383
      %662 = vmatprep.subr.mxu0 %v386
      %663 = vmatpush1.msra.mxu0 %v385
      %664 = vmatprep.subr.mxu0 %v388
      %665 = vmatpush1.msra.mxu0 %v387
      %666 = vmatprep.subr.mxu0 %v390
      %667 = vmatpush1.msra.mxu0 %v389
      %668 = vmatprep.subr.mxu0 %v392
      %669 = vmatpush1.msra.mxu0 %v391
      %670 = vmatprep.subr.mxu0 %v394
      %671 = vmatpush1.msra.mxu0 %v393
      %672 = vmatprep.subr.mxu0 %v396
      %673 = vmatpush1.msra.mxu0 %v395
      %674 = vmatprep.subr.mxu0 %v398
      %675 = vmatpush1.msra.mxu0 %v397
      %676 = vmatprep.mubr.f32.mxu0 %v268
      %677 = vmatmul.mubr.f32.gmra.mrb[0].mxu0 %v267
      %v678 = vpop.f32.mrb[0].mxu0
      %v679 = vadd.f32 0.0, %v678
      %v680 = vpop.f32.mrb[0].mxu0
      %v681 = vadd.f32 0.0, %v680
      %682 = vdwg.mxu0
      %v683 = vadd.f32 %v265, %v266
      %684 = vadd.xlane.f32.xlu0 %v683
      %v685 = vpop.xlane.xlu0 %684
      %v686 = vadd.f32 %v267, %v268
      %687 = vadd.xlane.f32.xlu0 %v686
      %v688 = vpop.xlane.xlu0 %687
      %v689 = vmul.f32 %v685, %v608
      %v690 = vmul.f32 %v685, %v610
      %v691 = vadd.f32 %v689, 1.6e-05
      %v692 = vadd.f32 %v690, 1.6e-05
      %v693 = vmin.f32 %v691, %v692
      %694 = vmin.xlane.f32.xlu0 %v693
      %v695 = vpop.xlane.xlu0 %694
      %v696 = vrot.slane %v695, 4
      %v697 = vmin.f32 %v695, %v696
      %v698 = vrot.slane %v697, 2
      %v699 = vmin.f32 %v697, %v698
      %v700 = vrot.slane %v699, 1
      %v701 = vmin.f32 %v699, %v700
      %v702 = vmax.f32 %v691, %v692
      %703 = vmax.xlane.f32.xlu0 %v702
      %v704 = vpop.xlane.xlu0 %703
      %v705 = vrot.slane %v704, 4
      %v706 = vmax.f32 %v704, %v705
      %v707 = vrot.slane %v706, 2
      %v708 = vmax.f32 %v706, %v707
      %v709 = vrot.slane %v708, 1
      %v710 = vmax.f32 %v708, %v709
      %v711 = vsub.f32 %v691, %v701
      %v712 = vsub.f32 %v692, %v701
      %v713 = vsub.f32 %v710, %v701
      %v714 = vrcp.pop %v713
      %v715 = vmul.f32 1.0, %v714
      %v716 = vmul.f32 %v711, %v715
      %v717 = vmul.f32 %v712, %v715
      %v718 = vadd.f32 %v716, 2.0
      %v719 = vadd.f32 %v717, 2.0
      %v720 = vmul.f32 %v466, %v688
      %v721 = vmul.f32 %v468, %v688
      %v722 = vadd.f32 %v720, 1.6e-05
      %v723 = vadd.f32 %v721, 1.6e-05
      %v724 = vmin.f32 %v722, %v723
      %725 = vmin.xlane.f32.xlu0 %v724
      %v726 = vpop.xlane.xlu0 %725
      %v727 = vrot.slane %v726, 4
      %v728 = vmin.f32 %v726, %v727
      %v729 = vrot.slane %v728, 2
      %v730 = vmin.f32 %v728, %v729
      %v731 = vrot.slane %v730, 1
      %v732 = vmin.f32 %v730, %v731
      %v733 = vmax.f32 %v722, %v723
      %734 = vmax.xlane.f32.xlu0 %v733
      %v735 = vpop.xlane.xlu0 %734
      %v736 = vrot.slane %v735, 4
      %v737 = vmax.f32 %v735, %v736
      %v738 = vrot.slane %v737, 2
      %v739 = vmax.f32 %v737, %v738
      %v740 = vrot.slane %v739, 1
      %v741 = vmax.f32 %v739, %v740
      %v742 = vsub.f32 %v722, %v732
      %v743 = vsub.f32 %v723, %v732
      %v744 = vsub.f32 %v741, %v732
      %v745 = vrcp.pop %v744
      %v746 = vmul.f32 1.0, %v745
      %v747 = vmul.f32 %v742, %v746
      %v748 = vmul.f32 %v743, %v746
      %v749 = vadd.f32 %v747, 2.0
      %v750 = vadd.f32 %v748, 2.0
      %v751 = vmul.f32 %v685, %v679
      %v752 = vmul.f32 %v685, %v681
      %v753 = vadd.f32 %v751, 1.6e-05
      %v754 = vadd.f32 %v752, 1.6e-05
      %v755 = vmin.f32 %v753, %v754
      %756 = vmin.xlane.f32.xlu0 %v755
      %v757 = vpop.xlane.xlu0 %756
      %v758 = vrot.slane %v757, 4
      %v759 = vmin.f32 %v757, %v758
      %v760 = vrot.slane %v759, 2
      %v761 = vmin.f32 %v759, %v760
      %v762 = vrot.slane %v761, 1
      %v763 = vmin.f32 %v761, %v762
      %v764 = vmax.f32 %v753, %v754
      %765 = vmax.xlane.f32.xlu0 %v764
      %v766 = vpop.xlane.xlu0 %765
      %v767 = vrot.slane %v766, 4
      %v768 = vmax.f32 %v766, %v767
      %v769 = vrot.slane %v768, 2
      %v770 = vmax.f32 %v768, %v769
      %v771 = vrot.slane %v770, 1
      %v772 = vmax.f32 %v770, %v771
      %v773 = vsub.f32 %v753, %v763
      %v774 = vsub.f32 %v754, %v763
      %v775 = vsub.f32 %v772, %v763
      %v776 = vrcp.pop %v775
      %v777 = vmul.f32 1.0, %v776
      %v778 = vmul.f32 %v773, %v777
      %v779 = vmul.f32 %v774, %v777
      %v780 = vadd.f32 %v778, 2.0
      %v781 = vadd.f32 %v779, 2.0
      %v782 = vmul.f32 %v537, %v688
      %v783 = vmul.f32 %v539, %v688
      %v784 = vadd.f32 %v782, 1.6e-05
      %v785 = vadd.f32 %v783, 1.6e-05
      %v786 = vmin.f32 %v784, %v785
      %787 = vmin.xlane.f32.xlu0 %v786
      %v788 = vpop.xlane.xlu0 %787
      %v789 = vrot.slane %v788, 4
      %v790 = vmin.f32 %v788, %v789
      %v791 = vrot.slane %v790, 2
      %v792 = vmin.f32 %v790, %v791
      %v793 = vrot.slane %v792, 1
      %v794 = vmin.f32 %v792, %v793
      %v795 = vmax.f32 %v784, %v785
      %796 = vmax.xlane.f32.xlu0 %v795
      %v797 = vpop.xlane.xlu0 %796
      %v798 = vrot.slane %v797, 4
      %v799 = vmax.f32 %v797, %v798
      %v800 = vrot.slane %v799, 2
      %v801 = vmax.f32 %v799, %v800
      %v802 = vrot.slane %v801, 1
      %v803 = vmax.f32 %v801, %v802
      %v804 = vsub.f32 %v784, %v794
      %v805 = vsub.f32 %v785, %v794
      %v806 = vsub.f32 %v803, %v794
      %v807 = vrcp.pop %v806
      %v808 = vmul.f32 1.0, %v807
      %v809 = vmul.f32 %v804, %v808
      %v810 = vmul.f32 %v805, %v808
      %v811 = vadd.f32 %v809, 2.0
      %v812 = vadd.f32 %v810, 2.0
      %v813 = vmul.f32 %v718, %v780
      %v814 = vmul.f32 %v719, %v781
      %v815 = vmul.f32 %v813, 1.442695
      %v816 = vpow.pop %v815
      %v817 = vmul.f32 %v814, 1.442695
      %v818 = vpow.pop %v817
      %819 = vmatprep.subr.mxu0 %v272
      %820 = vmatpush1.msra.mxu0 %v271
      %821 = vmatprep.subr.mxu0 %v274
      %822 = vmatpush1.msra.mxu0 %v273
      %823 = vmatprep.subr.mxu0 %v276
      %824 = vmatpush1.msra.mxu0 %v275
      %825 = vmatprep.subr.mxu0 %v278
      %826 = vmatpush1.msra.mxu0 %v277
      %827 = vmatprep.subr.mxu0 %v280
      %828 = vmatpush1.msra.mxu0 %v279
      %829 = vmatprep.subr.mxu0 %v282
      %830 = vmatpush1.msra.mxu0 %v281
      %831 = vmatprep.subr.mxu0 %v284
      %832 = vmatpush1.msra.mxu0 %v283
      %833 = vmatprep.subr.mxu0 %v286
      %834 = vmatpush1.msra.mxu0 %v285
      %835 = vmatprep.subr.mxu0 %v288
      %836 = vmatpush1.msra.mxu0 %v287
      %837 = vmatprep.subr.mxu0 %v290
      %838 = vmatpush1.msra.mxu0 %v289
      %839 = vmatprep.subr.mxu0 %v292
      %840 = vmatpush1.msra.mxu0 %v291
      %841 = vmatprep.subr.mxu0 %v294
      %842 = vmatpush1.msra.mxu0 %v293
      %843 = vmatprep.subr.mxu0 %v296
      %844 = vmatpush1.msra.mxu0 %v295
      %845 = vmatprep.subr.mxu0 %v298
      %846 = vmatpush1.msra.mxu0 %v297
      %847 = vmatprep.subr.mxu0 %v300
      %848 = vmatpush1.msra.mxu0 %v299
      %849 = vmatprep.subr.mxu0 %v302
      %850 = vmatpush1.msra.mxu0 %v301
      %851 = vmatprep.subr.mxu0 %v304
      %852 = vmatpush1.msra.mxu0 %v303
      %853 = vmatprep.subr.mxu0 %v306
      %854 = vmatpush1.msra.mxu0 %v305
      %855 = vmatprep.subr.mxu0 %v308
      %856 = vmatpush1.msra.mxu0 %v307
      %857 = vmatprep.subr.mxu0 %v310
      %858 = vmatpush1.msra.mxu0 %v309
      %859 = vmatprep.subr.mxu0 %v312
      %860 = vmatpush1.msra.mxu0 %v311
      %861 = vmatprep.subr.mxu0 %v314
      %862 = vmatpush1.msra.mxu0 %v313
      %863 = vmatprep.subr.mxu0 %v316
      %864 = vmatpush1.msra.mxu0 %v315
      %865 = vmatprep.subr.mxu0 %v318
      %866 = vmatpush1.msra.mxu0 %v317
      %867 = vmatprep.subr.mxu0 %v320
      %868 = vmatpush1.msra.mxu0 %v319
      %869 = vmatprep.subr.mxu0 %v322
      %870 = vmatpush1.msra.mxu0 %v321
      %871 = vmatprep.subr.mxu0 %v324
      %872 = vmatpush1.msra.mxu0 %v323
      %873 = vmatprep.subr.mxu0 %v326
      %874 = vmatpush1.msra.mxu0 %v325
      %875 = vmatprep.subr.mxu0 %v328
      %876 = vmatpush1.msra.mxu0 %v327
      %877 = vmatprep.subr.mxu0 %v330
      %878 = vmatpush1.msra.mxu0 %v329
      %879 = vmatprep.subr.mxu0 %v332
      %880 = vmatpush1.msra.mxu0 %v331
      %881 = vmatprep.subr.mxu0 %v334
      %882 = vmatpush1.msra.mxu0 %v333
      %883 = vmatprep.mubr.f32.mxu0 %v818
      %884 = vmatmul.mubr.f32.gmra.mrb[0].mxu0 %v816
      %v885 = vpop.f32.mrb[0].mxu0
      %v886 = vadd.f32 0.0, %v885
      %v887 = vpop.f32.mrb[0].mxu0
      %v888 = vadd.f32 0.0, %v887
      %889 = vdwg.mxu0
      %v890 = vrcp.pop %v886
      %v891 = vrcp.pop %v888
      %892 = vmatprep.subr.mxu0 %v336
      %893 = vmatpush1.msra.mxu0 %v335
      %894 = vmatprep.subr.mxu0 %v338
      %895 = vmatpush1.msra.mxu0 %v337
      %896 = vmatprep.subr.mxu0 %v340
      %897 = vmatpush1.msra.mxu0 %v339
      %898 = vmatprep.subr.mxu0 %v342
      %899 = vmatpush1.msra.mxu0 %v341
      %900 = vmatprep.subr.mxu0 %v344
      %901 = vmatpush1.msra.mxu0 %v343
      %902 = vmatprep.subr.mxu0 %v346
      %903 = vmatpush1.msra.mxu0 %v345
      %904 = vmatprep.subr.mxu0 %v348
      %905 = vmatpush1.msra.mxu0 %v347
      %906 = vmatprep.subr.mxu0 %v350
      %907 = vmatpush1.msra.mxu0 %v349
      %908 = vmatprep.subr.mxu0 %v352
      %909 = vmatpush1.msra.mxu0 %v351
      %910 = vmatprep.subr.mxu0 %v354
      %911 = vmatpush1.msra.mxu0 %v353
      %912 = vmatprep.subr.mxu0 %v356
      %913 = vmatpush1.msra.mxu0 %v355
      %914 = vmatprep.subr.mxu0 %v358
      %915 = vmatpush1.msra.mxu0 %v357
      %916 = vmatprep.subr.mxu0 %v360
      %917 = vmatpush1.msra.mxu0 %v359
      %918 = vmatprep.subr.mxu0 %v362
      %919 = vmatpush1.msra.mxu0 %v361
      %920 = vmatprep.subr.mxu0 %v364
      %921 = vmatpush1.msra.mxu0 %v363
      %922 = vmatprep.subr.mxu0 %v366
      %923 = vmatpush1.msra.mxu0 %v365
      %924 = vmatprep.subr.mxu0 %v368
      %925 = vmatpush1.msra.mxu0 %v367
      %926 = vmatprep.subr.mxu0 %v370
      %927 = vmatpush1.msra.mxu0 %v369
      %928 = vmatprep.subr.mxu0 %v372
      %929 = vmatpush1.msra.mxu0 %v371
      %930 = vmatprep.subr.mxu0 %v374
      %931 = vmatpush1.msra.mxu0 %v373
      %932 = vmatprep.subr.mxu0 %v376
      %933 = vmatpush1.msra.mxu0 %v375
      %934 = vmatprep.subr.mxu0 %v378
      %935 = vmatpush1.msra.mxu0 %v377
      %936 = vmatprep.subr.mxu0 %v380
      %937 = vmatpush1.msra.mxu0 %v379
      %938 = vmatprep.subr.mxu0 %v382
      %939 = vmatpush1.msra.mxu0 %v381
      %940 = vmatprep.subr.mxu0 %v384
      %941 = vmatpush1.msra.mxu0 %v383
      %942 = vmatprep.subr.mxu0 %v386
      %943 = vmatpush1.msra.mxu0 %v385
      %944 = vmatprep.subr.mxu0 %v388
      %945 = vmatpush1.msra.mxu0 %v387
      %946 = vmatprep.subr.mxu0 %v390
      %947 = vmatpush1.msra.mxu0 %v389
      %948 = vmatprep.subr.mxu0 %v392
      %949 = vmatpush1.msra.mxu0 %v391
      %950 = vmatprep.subr.mxu0 %v394
      %951 = vmatpush1.msra.mxu0 %v393
      %952 = vmatprep.subr.mxu0 %v396
      %953 = vmatpush1.msra.mxu0 %v395
      %954 = vmatprep.subr.mxu0 %v398
      %955 = vmatpush1.msra.mxu0 %v397
      %956 = vmatprep.mubr.f32.mxu0 %v818
      %957 = vmatmul.mubr.f32.gmra.mrb[0].mxu0 %v816
      %v958 = vpop.f32.mrb[0].mxu0
      %v959 = vadd.f32 0.0, %v958
      %v960 = vpop.f32.mrb[0].mxu0
      %v961 = vadd.f32 0.0, %v960
      %962 = vdwg.mxu0
      %v963 = vrcp.pop %v959
      %v964 = vrcp.pop %v961
      %v965 = vadd.f32 %v890, %v963
      %v966 = vadd.f32 %v891, %v964
      %v967 = vmul.f32 %v816, %v965
      %v968 = vmul.f32 %v818, %v966
      %v969 = vmax.f32 %v967, %v968
      %970 = vmax.xlane.f32.xlu0 %v969
      %v971 = vpop.xlane.xlu0 %970
      %v972 = vrot.slane %v971, 4
      %v973 = vmax.f32 %v971, %v972
      %v974 = vrot.slane %v973, 2
      %v975 = vmax.f32 %v973, %v974
      %v976 = vrot.slane %v975, 1
      %v977 = vmax.f32 %v975, %v976
      %v978 = vrcp.pop %v977
      %v979 = vmul.f32 1.0, %v978
      %v980 = vmul.f32 %v967, %v979
      %v981 = vmul.f32 %v968, %v979
      %v982 = vadd.f32 %v980, 0.0
      %v983 = vadd.f32 %v981, 0.0
      %v984 = vmul.f32 %v718, %v811
      %v985 = vmul.f32 %v719, %v812
      %v986 = vmul.f32 %v984, 1.442695
      %v987 = vpow.pop %v986
      %v988 = vmul.f32 %v985, 1.442695
      %v989 = vpow.pop %v988
      %990 = vmatprep.subr.mxu0 %v272
      %991 = vmatpush1.msra.mxu0 %v271
      %992 = vmatprep.subr.mxu0 %v274
      %993 = vmatpush1.msra.mxu0 %v273
      %994 = vmatprep.subr.mxu0 %v276
      %995 = vmatpush1.msra.mxu0 %v275
      %996 = vmatprep.subr.mxu0 %v278
      %997 = vmatpush1.msra.mxu0 %v277
      %998 = vmatprep.subr.mxu0 %v280
      %999 = vmatpush1.msra.mxu0 %v279
      %1000 = vmatprep.subr.mxu0 %v282
      %1001 = vmatpush1.msra.mxu0 %v281
      %1002 = vmatprep.subr.mxu0 %v284
      %1003 = vmatpush1.msra.mxu0 %v283
      %1004 = vmatprep.subr.mxu0 %v286
      %1005 = vmatpush1.msra.mxu0 %v285
      %1006 = vmatprep.subr.mxu0 %v288
      %1007 = vmatpush1.msra.mxu0 %v287
      %1008 = vmatprep.subr.mxu0 %v290
      %1009 = vmatpush1.msra.mxu0 %v289
      %1010 = vmatprep.subr.mxu0 %v292
      %1011 = vmatpush1.msra.mxu0 %v291
      %1012 = vmatprep.subr.mxu0 %v294
      %1013 = vmatpush1.msra.mxu0 %v293
      %1014 = vmatprep.subr.mxu0 %v296
      %1015 = vmatpush1.msra.mxu0 %v295
      %1016 = vmatprep.subr.mxu0 %v298
      %1017 = vmatpush1.msra.mxu0 %v297
      %1018 = vmatprep.subr.mxu0 %v300
      %1019 = vmatpush1.msra.mxu0 %v299
      %1020 = vmatprep.subr.mxu0 %v302
      %1021 = vmatpush1.msra.mxu0 %v301
      %1022 = vmatprep.subr.mxu0 %v304
      %1023 = vmatpush1.msra.mxu0 %v303
      %1024 = vmatprep.subr.mxu0 %v306
      %1025 = vmatpush1.msra.mxu0 %v305
      %1026 = vmatprep.subr.mxu0 %v308
      %1027 = vmatpush1.msra.mxu0 %v307
      %1028 = vmatprep.subr.mxu0 %v310
      %1029 = vmatpush1.msra.mxu0 %v309
      %1030 = vmatprep.subr.mxu0 %v312
      %1031 = vmatpush1.msra.mxu0 %v311
      %1032 = vmatprep.subr.mxu0 %v314
      %1033 = vmatpush1.msra.mxu0 %v313
      %1034 = vmatprep.subr.mxu0 %v316
      %1035 = vmatpush1.msra.mxu0 %v315
      %1036 = vmatprep.subr.mxu0 %v318
      %1037 = vmatpush1.msra.mxu0 %v317
      %1038 = vmatprep.subr.mxu0 %v320
      %1039 = vmatpush1.msra.mxu0 %v319
      %1040 = vmatprep.subr.mxu0 %v322
      %1041 = vmatpush1.msra.mxu0 %v321
      %1042 = vmatprep.subr.mxu0 %v324
      %1043 = vmatpush1.msra.mxu0 %v323
      %1044 = vmatprep.subr.mxu0 %v326
      %1045 = vmatpush1.msra.mxu0 %v325
      %1046 = vmatprep.subr.mxu0 %v328
      %1047 = vmatpush1.msra.mxu0 %v327
      %1048 = vmatprep.subr.mxu0 %v330
      %1049 = vmatpush1.msra.mxu0 %v329
      %1050 = vmatprep.subr.mxu0 %v332
      %1051 = vmatpush1.msra.mxu0 %v331
      %1052 = vmatprep.subr.mxu0 %v334
      %1053 = vmatpush1.msra.mxu0 %v333
      %1054 = vmatprep.mubr.f32.mxu0 %v989
      %1055 = vmatmul.mubr.f32.gmra.mrb[0].mxu0 %v987
      %v1056 = vpop.f32.mrb[0].mxu0
      %v1057 = vadd.f32 0.0, %v1056
      %v1058 = vpop.f32.mrb[0].mxu0
      %v1059 = vadd.f32 0.0, %v1058
      %1060 = vdwg.mxu0
      %v1061 = vrcp.pop %v1057
      %v1062 = vrcp.pop %v1059
      %1063 = vmatprep.subr.mxu0 %v336
      %1064 = vmatpush1.msra.mxu0 %v335
      %1065 = vmatprep.subr.mxu0 %v338
      %1066 = vmatpush1.msra.mxu0 %v337
      %1067 = vmatprep.subr.mxu0 %v340
      %1068 = vmatpush1.msra.mxu0 %v339
      %1069 = vmatprep.subr.mxu0 %v342
      %1070 = vmatpush1.msra.mxu0 %v341
      %1071 = vmatprep.subr.mxu0 %v344
      %1072 = vmatpush1.msra.mxu0 %v343
      %1073 = vmatprep.subr.mxu0 %v346
      %1074 = vmatpush1.msra.mxu0 %v345
      %1075 = vmatprep.subr.mxu0 %v348
      %1076 = vmatpush1.msra.mxu0 %v347
      %1077 = vmatprep.subr.mxu0 %v350
      %1078 = vmatpush1.msra.mxu0 %v349
      %1079 = vmatprep.subr.mxu0 %v352
      %1080 = vmatpush1.msra.mxu0 %v351
      %1081 = vmatprep.subr.mxu0 %v354
      %1082 = vmatpush1.msra.mxu0 %v353
      %1083 = vmatprep.subr.mxu0 %v356
      %1084 = vmatpush1.msra.mxu0 %v355
      %1085 = vmatprep.subr.mxu0 %v358
      %1086 = vmatpush1.msra.mxu0 %v357
      %1087 = vmatprep.subr.mxu0 %v360
      %1088 = vmatpush1.msra.mxu0 %v359
      %1089 = vmatprep.subr.mxu0 %v362
      %1090 = vmatpush1.msra.mxu0 %v361
      %1091 = vmatprep.subr.mxu0 %v364
      %1092 = vmatpush1.msra.mxu0 %v363
      %1093 = vmatprep.subr.mxu0 %v366
      %1094 = vmatpush1.msra.mxu0 %v365
      %1095 = vmatprep.subr.mxu0 %v368
      %1096 = vmatpush1.msra.mxu0 %v367
      %1097 = vmatprep.subr.mxu0 %v370
      %1098 = vmatpush1.msra.mxu0 %v369
      %1099 = vmatprep.subr.mxu0 %v372
      %1100 = vmatpush1.msra.mxu0 %v371
      %1101 = vmatprep.subr.mxu0 %v374
      %1102 = vmatpush1.msra.mxu0 %v373
      %1103 = vmatprep.subr.mxu0 %v376
      %1104 = vmatpush1.msra.mxu0 %v375
      %1105 = vmatprep.subr.mxu0 %v378
      %1106 = vmatpush1.msra.mxu0 %v377
      %1107 = vmatprep.subr.mxu0 %v380
      %1108 = vmatpush1.msra.mxu0 %v379
      %1109 = vmatprep.subr.mxu0 %v382
      %1110 = vmatpush1.msra.mxu0 %v381
      %1111 = vmatprep.subr.mxu0 %v384
      %1112 = vmatpush1.msra.mxu0 %v383
      %1113 = vmatprep.subr.mxu0 %v386
      %1114 = vmatpush1.msra.mxu0 %v385
      %1115 = vmatprep.subr.mxu0 %v388
      %1116 = vmatpush1.msra.mxu0 %v387
      %1117 = vmatprep.subr.mxu0 %v390
      %1118 = vmatpush1.msra.mxu0 %v389
      %1119 = vmatprep.subr.mxu0 %v392
      %1120 = vmatpush1.msra.mxu0 %v391
      %1121 = vmatprep.subr.mxu0 %v394
      %1122 = vmatpush1.msra.mxu0 %v393
      %1123 = vmatprep.subr.mxu0 %v396
      %1124 = vmatpush1.msra.mxu0 %v395
      %1125 = vmatprep.subr.mxu0 %v398
      %1126 = vmatpush1.msra.mxu0 %v397
      %1127 = vmatprep.mubr.f32.mxu0 %v989
      %1128 = vmatmul.mubr.f32.gmra.mrb[0].mxu0 %v987
      %v1129 = vpop.f32.mrb[0].mxu0
      %v1130 = vadd.f32 0.0, %v1129
      %v1131 = vpop.f32.mrb[0].mxu0
      %v1132 = vadd.f32 0.0, %v1131
      %1133 = vdwg.mxu0
      %v1134 = vrcp.pop %v1130
      %v1135 = vrcp.pop %v1132
      %v1136 = vadd.f32 %v1061, %v1134
      %v1137 = vadd.f32 %v1062, %v1135
      %v1138 = vmul.f32 %v987, %v1136
      %v1139 = vmul.f32 %v989, %v1137
      %v1140 = vmax.f32 %v1138, %v1139
      %1141 = vmax.xlane.f32.xlu0 %v1140
      %v1142 = vpop.xlane.xlu0 %1141
      %v1143 = vrot.slane %v1142, 4
      %v1144 = vmax.f32 %v1142, %v1143
      %v1145 = vrot.slane %v1144, 2
      %v1146 = vmax.f32 %v1144, %v1145
      %v1147 = vrot.slane %v1146, 1
      %v1148 = vmax.f32 %v1146, %v1147
      %v1149 = vrcp.pop %v1148
      %v1150 = vmul.f32 1.0, %v1149
      %v1151 = vmul.f32 %v1138, %v1150
      %v1152 = vmul.f32 %v1139, %v1150
      %v1153 = vadd.f32 %v982, %v1151
      %v1154 = vadd.f32 %v983, %v1152
      %v1155 = vmul.f32 %v749, %v780
      %v1156 = vmul.f32 %v750, %v781
      %v1157 = vmul.f32 %v1155, 1.442695
      %v1158 = vpow.pop %v1157
      %v1159 = vmul.f32 %v1156, 1.442695
      %v1160 = vpow.pop %v1159
      %1161 = vmatprep.subr.mxu0 %v272
      %1162 = vmatpush1.msra.mxu0 %v271
      %1163 = vmatprep.subr.mxu0 %v274
      %1164 = vmatpush1.msra.mxu0 %v273
      %1165 = vmatprep.subr.mxu0 %v276
      %1166 = vmatpush1.msra.mxu0 %v275
      %1167 = vmatprep.subr.mxu0 %v278
      %1168 = vmatpush1.msra.mxu0 %v277
      %1169 = vmatprep.subr.mxu0 %v280
      %1170 = vmatpush1.msra.mxu0 %v279
      %1171 = vmatprep.subr.mxu0 %v282
      %1172 = vmatpush1.msra.mxu0 %v281
      %1173 = vmatprep.subr.mxu0 %v284
      %1174 = vmatpush1.msra.mxu0 %v283
      %1175 = vmatprep.subr.mxu0 %v286
      %1176 = vmatpush1.msra.mxu0 %v285
      %1177 = vmatprep.subr.mxu0 %v288
      %1178 = vmatpush1.msra.mxu0 %v287
      %1179 = vmatprep.subr.mxu0 %v290
      %1180 = vmatpush1.msra.mxu0 %v289
      %1181 = vmatprep.subr.mxu0 %v292
      %1182 = vmatpush1.msra.mxu0 %v291
      %1183 = vmatprep.subr.mxu0 %v294
      %1184 = vmatpush1.msra.mxu0 %v293
      %1185 = vmatprep.subr.mxu0 %v296
      %1186 = vmatpush1.msra.mxu0 %v295
      %1187 = vmatprep.subr.mxu0 %v298
      %1188 = vmatpush1.msra.mxu0 %v297
      %1189 = vmatprep.subr.mxu0 %v300
      %1190 = vmatpush1.msra.mxu0 %v299
      %1191 = vmatprep.subr.mxu0 %v302
      %1192 = vmatpush1.msra.mxu0 %v301
      %1193 = vmatprep.subr.mxu0 %v304
      %1194 = vmatpush1.msra.mxu0 %v303
      %1195 = vmatprep.subr.mxu0 %v306
      %1196 = vmatpush1.msra.mxu0 %v305
      %1197 = vmatprep.subr.mxu0 %v308
      %1198 = vmatpush1.msra.mxu0 %v307
      %1199 = vmatprep.subr.mxu0 %v310
      %1200 = vmatpush1.msra.mxu0 %v309
      %1201 = vmatprep.subr.mxu0 %v312
      %1202 = vmatpush1.msra.mxu0 %v311
      %1203 = vmatprep.subr.mxu0 %v314
      %1204 = vmatpush1.msra.mxu0 %v313
      %1205 = vmatprep.subr.mxu0 %v316
      %1206 = vmatpush1.msra.mxu0 %v315
      %1207 = vmatprep.subr.mxu0 %v318
      %1208 = vmatpush1.msra.mxu0 %v317
      %1209 = vmatprep.subr.mxu0 %v320
      %1210 = vmatpush1.msra.mxu0 %v319
      %1211 = vmatprep.subr.mxu0 %v322
      %1212 = vmatpush1.msra.mxu0 %v321
      %1213 = vmatprep.subr.mxu0 %v324
      %1214 = vmatpush1.msra.mxu0 %v323
      %1215 = vmatprep.subr.mxu0 %v326
      %1216 = vmatpush1.msra.mxu0 %v325
      %1217 = vmatprep.subr.mxu0 %v328
      %1218 = vmatpush1.msra.mxu0 %v327
      %1219 = vmatprep.subr.mxu0 %v330
      %1220 = vmatpush1.msra.mxu0 %v329
      %1221 = vmatprep.subr.mxu0 %v332
      %1222 = vmatpush1.msra.mxu0 %v331
      %1223 = vmatprep.subr.mxu0 %v334
      %1224 = vmatpush1.msra.mxu0 %v333
      %1225 = vmatprep.mubr.f32.mxu0 %v1160
      %1226 = vmatmul.mubr.f32.gmra.mrb[0].mxu0 %v1158
      %v1227 = vpop.f32.mrb[0].mxu0
      %v1228 = vadd.f32 0.0, %v1227
      %v1229 = vpop.f32.mrb[0].mxu0
      %v1230 = vadd.f32 0.0, %v1229
      %1231 = vdwg.mxu0
      %v1232 = vrcp.pop %v1228
      %v1233 = vrcp.pop %v1230
      %1234 = vmatprep.subr.mxu0 %v336
      %1235 = vmatpush1.msra.mxu0 %v335
      %1236 = vmatprep.subr.mxu0 %v338
      %1237 = vmatpush1.msra.mxu0 %v337
      %1238 = vmatprep.subr.mxu0 %v340
      %1239 = vmatpush1.msra.mxu0 %v339
      %1240 = vmatprep.subr.mxu0 %v342
      %1241 = vmatpush1.msra.mxu0 %v341
      %1242 = vmatprep.subr.mxu0 %v344
      %1243 = vmatpush1.msra.mxu0 %v343
      %1244 = vmatprep.subr.mxu0 %v346
      %1245 = vmatpush1.msra.mxu0 %v345
      %1246 = vmatprep.subr.mxu0 %v348
      %1247 = vmatpush1.msra.mxu0 %v347
      %1248 = vmatprep.subr.mxu0 %v350
      %1249 = vmatpush1.msra.mxu0 %v349
      %1250 = vmatprep.subr.mxu0 %v352
      %1251 = vmatpush1.msra.mxu0 %v351
      %1252 = vmatprep.subr.mxu0 %v354
      %1253 = vmatpush1.msra.mxu0 %v353
      %1254 = vmatprep.subr.mxu0 %v356
      %1255 = vmatpush1.msra.mxu0 %v355
      %1256 = vmatprep.subr.mxu0 %v358
      %1257 = vmatpush1.msra.mxu0 %v357
      %1258 = vmatprep.subr.mxu0 %v360
      %1259 = vmatpush1.msra.mxu0 %v359
      %1260 = vmatprep.subr.mxu0 %v362
      %1261 = vmatpush1.msra.mxu0 %v361
      %1262 = vmatprep.subr.mxu0 %v364
      %1263 = vmatpush1.msra.mxu0 %v363
      %1264 = vmatprep.subr.mxu0 %v366
      %1265 = vmatpush1.msra.mxu0 %v365
      %1266 = vmatprep.subr.mxu0 %v368
      %1267 = vmatpush1.msra.mxu0 %v367
      %1268 = vmatprep.subr.mxu0 %v370
      %1269 = vmatpush1.msra.mxu0 %v369
      %1270 = vmatprep.subr.mxu0 %v372
      %1271 = vmatpush1.msra.mxu0 %v371
      %1272 = vmatprep.subr.mxu0 %v374
      %1273 = vmatpush1.msra.mxu0 %v373
      %1274 = vmatprep.subr.mxu0 %v376
      %1275 = vmatpush1.msra.mxu0 %v375
      %1276 = vmatprep.subr.mxu0 %v378
      %1277 = vmatpush1.msra.mxu0 %v377
      %1278 = vmatprep.subr.mxu0 %v380
      %1279 = vmatpush1.msra.mxu0 %v379
      %1280 = vmatprep.subr.mxu0 %v382
      %1281 = vmatpush1.msra.mxu0 %v381
      %1282 = vmatprep.subr.mxu0 %v384
      %1283 = vmatpush1.msra.mxu0 %v383
      %1284 = vmatprep.subr.mxu0 %v386
      %1285 = vmatpush1.msra.mxu0 %v385
      %1286 = vmatprep.subr.mxu0 %v388
      %1287 = vmatpush1.msra.mxu0 %v387
      %1288 = vmatprep.subr.mxu0 %v390
      %1289 = vmatpush1.msra.mxu0 %v389
      %1290 = vmatprep.subr.mxu0 %v392
      %1291 = vmatpush1.msra.mxu0 %v391
      %1292 = vmatprep.subr.mxu0 %v394
      %1293 = vmatpush1.msra.mxu0 %v393
      %1294 = vmatprep.subr.mxu0 %v396
      %1295 = vmatpush1.msra.mxu0 %v395
      %1296 = vmatprep.subr.mxu0 %v398
      %1297 = vmatpush1.msra.mxu0 %v397
      %1298 = vmatprep.mubr.f32.mxu0 %v1160
      %1299 = vmatmul.mubr.f32.gmra.mrb[0].mxu0 %v1158
      %v1300 = vpop.f32.mrb[0].mxu0
      %v1301 = vadd.f32 0.0, %v1300
      %v1302 = vpop.f32.mrb[0].mxu0
      %v1303 = vadd.f32 0.0, %v1302
      %1304 = vdwg.mxu0
      %v1305 = vrcp.pop %v1301
      %v1306 = vrcp.pop %v1303
      %v1307 = vadd.f32 %v1232, %v1305
      %v1308 = vadd.f32 %v1233, %v1306
      %v1309 = vmul.f32 %v1158, %v1307
      %v1310 = vmul.f32 %v1160, %v1308
      %v1311 = vmax.f32 %v1309, %v1310
      %1312 = vmax.xlane.f32.xlu0 %v1311
      %v1313 = vpop.xlane.xlu0 %1312
      %v1314 = vrot.slane %v1313, 4
      %v1315 = vmax.f32 %v1313, %v1314
      %v1316 = vrot.slane %v1315, 2
      %v1317 = vmax.f32 %v1315, %v1316
      %v1318 = vrot.slane %v1317, 1
      %v1319 = vmax.f32 %v1317, %v1318
      %v1320 = vrcp.pop %v1319
      %v1321 = vmul.f32 1.0, %v1320
      %v1322 = vmul.f32 %v1309, %v1321
      %v1323 = vmul.f32 %v1310, %v1321
      %v1324 = vadd.f32 %v1153, %v1322
      %v1325 = vadd.f32 %v1154, %v1323
      %v1326 = vmul.f32 %v749, %v811
      %v1327 = vmul.f32 %v750, %v812
      %v1328 = vmul.f32 %v1326, 1.442695
      %v1329 = vpow.pop %v1328
      %v1330 = vmul.f32 %v1327, 1.442695
      %v1331 = vpow.pop %v1330
      %1332 = vmatprep.subr.mxu0 %v272
      %1333 = vmatpush1.msra.mxu0 %v271
      %1334 = vmatprep.subr.mxu0 %v274
      %1335 = vmatpush1.msra.mxu0 %v273
      %1336 = vmatprep.subr.mxu0 %v276
      %1337 = vmatpush1.msra.mxu0 %v275
      %1338 = vmatprep.subr.mxu0 %v278
      %1339 = vmatpush1.msra.mxu0 %v277
      %1340 = vmatprep.subr.mxu0 %v280
      %1341 = vmatpush1.msra.mxu0 %v279
      %1342 = vmatprep.subr.mxu0 %v282
      %1343 = vmatpush1.msra.mxu0 %v281
      %1344 = vmatprep.subr.mxu0 %v284
      %1345 = vmatpush1.msra.mxu0 %v283
      %1346 = vmatprep.subr.mxu0 %v286
      %1347 = vmatpush1.msra.mxu0 %v285
      %1348 = vmatprep.subr.mxu0 %v288
      %1349 = vmatpush1.msra.mxu0 %v287
      %1350 = vmatprep.subr.mxu0 %v290
      %1351 = vmatpush1.msra.mxu0 %v289
      %1352 = vmatprep.subr.mxu0 %v292
      %1353 = vmatpush1.msra.mxu0 %v291
      %1354 = vmatprep.subr.mxu0 %v294
      %1355 = vmatpush1.msra.mxu0 %v293
      %1356 = vmatprep.subr.mxu0 %v296
      %1357 = vmatpush1.msra.mxu0 %v295
      %1358 = vmatprep.subr.mxu0 %v298
      %1359 = vmatpush1.msra.mxu0 %v297
      %1360 = vmatprep.subr.mxu0 %v300
      %1361 = vmatpush1.msra.mxu0 %v299
      %1362 = vmatprep.subr.mxu0 %v302
      %1363 = vmatpush1.msra.mxu0 %v301
      %1364 = vmatprep.subr.mxu0 %v304
      %1365 = vmatpush1.msra.mxu0 %v303
      %1366 = vmatprep.subr.mxu0 %v306
      %1367 = vmatpush1.msra.mxu0 %v305
      %1368 = vmatprep.subr.mxu0 %v308
      %1369 = vmatpush1.msra.mxu0 %v307
      %1370 = vmatprep.subr.mxu0 %v310
      %1371 = vmatpush1.msra.mxu0 %v309
      %1372 = vmatprep.subr.mxu0 %v312
      %1373 = vmatpush1.msra.mxu0 %v311
      %1374 = vmatprep.subr.mxu0 %v314
      %1375 = vmatpush1.msra.mxu0 %v313
      %1376 = vmatprep.subr.mxu0 %v316
      %1377 = vmatpush1.msra.mxu0 %v315
      %1378 = vmatprep.subr.mxu0 %v318
      %1379 = vmatpush1.msra.mxu0 %v317
      %1380 = vmatprep.subr.mxu0 %v320
      %1381 = vmatpush1.msra.mxu0 %v319
      %1382 = vmatprep.subr.mxu0 %v322
      %1383 = vmatpush1.msra.mxu0 %v321
      %1384 = vmatprep.subr.mxu0 %v324
      %1385 = vmatpush1.msra.mxu0 %v323
      %1386 = vmatprep.subr.mxu0 %v326
      %1387 = vmatpush1.msra.mxu0 %v325
      %1388 = vmatprep.subr.mxu0 %v328
      %1389 = vmatpush1.msra.mxu0 %v327
      %1390 = vmatprep.subr.mxu0 %v330
      %1391 = vmatpush1.msra.mxu0 %v329
      %1392 = vmatprep.subr.mxu0 %v332
      %1393 = vmatpush1.msra.mxu0 %v331
      %1394 = vmatprep.subr.mxu0 %v334
      %1395 = vmatpush1.msra.mxu0 %v333
      %1396 = vmatprep.mubr.f32.mxu0 %v1331
      %1397 = vmatmul.mubr.f32.gmra.mrb[0].mxu0 %v1329
      %v1398 = vpop.f32.mrb[0].mxu0
      %v1399 = vadd.f32 0.0, %v1398
      %v1400 = vpop.f32.mrb[0].mxu0
      %v1401 = vadd.f32 0.0, %v1400
      %1402 = vdwg.mxu0
      %v1403 = vrcp.pop %v1399
      %v1404 = vrcp.pop %v1401
      %1405 = vmatprep.subr.mxu0 %v336
      %1406 = vmatpush1.msra.mxu0 %v335
      %1407 = vmatprep.subr.mxu0 %v338
      %1408 = vmatpush1.msra.mxu0 %v337
      %1409 = vmatprep.subr.mxu0 %v340
      %1410 = vmatpush1.msra.mxu0 %v339
      %1411 = vmatprep.subr.mxu0 %v342
      %1412 = vmatpush1.msra.mxu0 %v341
      %1413 = vmatprep.subr.mxu0 %v344
      %1414 = vmatpush1.msra.mxu0 %v343
      %1415 = vmatprep.subr.mxu0 %v346
      %1416 = vmatpush1.msra.mxu0 %v345
      %1417 = vmatprep.subr.mxu0 %v348
      %1418 = vmatpush1.msra.mxu0 %v347
      %1419 = vmatprep.subr.mxu0 %v350
      %1420 = vmatpush1.msra.mxu0 %v349
      %1421 = vmatprep.subr.mxu0 %v352
      %1422 = vmatpush1.msra.mxu0 %v351
      %1423 = vmatprep.subr.mxu0 %v354
      %1424 = vmatpush1.msra.mxu0 %v353
      %1425 = vmatprep.subr.mxu0 %v356
      %1426 = vmatpush1.msra.mxu0 %v355
      %1427 = vmatprep.subr.mxu0 %v358
      %1428 = vmatpush1.msra.mxu0 %v357
      %1429 = vmatprep.subr.mxu0 %v360
      %1430 = vmatpush1.msra.mxu0 %v359
      %1431 = vmatprep.subr.mxu0 %v362
      %1432 = vmatpush1.msra.mxu0 %v361
      %1433 = vmatprep.subr.mxu0 %v364
      %1434 = vmatpush1.msra.mxu0 %v363
      %1435 = vmatprep.subr.mxu0 %v366
      %1436 = vmatpush1.msra.mxu0 %v365
      %1437 = vmatprep.subr.mxu0 %v368
      %1438 = vmatpush1.msra.mxu0 %v367
      %1439 = vmatprep.subr.mxu0 %v370
      %1440 = vmatpush1.msra.mxu0 %v369
      %1441 = vmatprep.subr.mxu0 %v372
      %1442 = vmatpush1.msra.mxu0 %v371
      %1443 = vmatprep.subr.mxu0 %v374
      %1444 = vmatpush1.msra.mxu0 %v373
      %1445 = vmatprep.subr.mxu0 %v376
      %1446 = vmatpush1.msra.mxu0 %v375
      %1447 = vmatprep.subr.mxu0 %v378
      %1448 = vmatpush1.msra.mxu0 %v377
      %1449 = vmatprep.subr.mxu0 %v380
      %1450 = vmatpush1.msra.mxu0 %v379
      %1451 = vmatprep.subr.mxu0 %v382
      %1452 = vmatpush1.msra.mxu0 %v381
      %1453 = vmatprep.subr.mxu0 %v384
      %1454 = vmatpush1.msra.mxu0 %v383
      %1455 = vmatprep.subr.mxu0 %v386
      %1456 = vmatpush1.msra.mxu0 %v385
      %1457 = vmatprep.subr.mxu0 %v388
      %1458 = vmatpush1.msra.mxu0 %v387
      %1459 = vmatprep.subr.mxu0 %v390
      %1460 = vmatpush1.msra.mxu0 %v389
      %1461 = vmatprep.subr.mxu0 %v392
      %1462 = vmatpush1.msra.mxu0 %v391
      %1463 = vmatprep.subr.mxu0 %v394
      %1464 = vmatpush1.msra.mxu0 %v393
      %1465 = vmatprep.subr.mxu0 %v396
      %1466 = vmatpush1.msra.mxu0 %v395
      %1467 = vmatprep.subr.mxu0 %v398
      %1468 = vmatpush1.msra.mxu0 %v397
      %1469 = vmatprep.mubr.f32.mxu0 %v1331
      %1470 = vmatmul.mubr.f32.gmra.mrb[0].mxu0 %v1329
      %v1471 = vpop.f32.mrb[0].mxu0
      %v1472 = vadd.f32 0.0, %v1471
      %v1473 = vpop.f32.mrb[0].mxu0
      %v1474 = vadd.f32 0.0, %v1473
      %1475 = vdwg.mxu0
      %v1476 = vrcp.pop %v1472
      %v1477 = vrcp.pop %v1474
      %v1478 = vadd.f32 %v1403, %v1476
      %v1479 = vadd.f32 %v1404, %v1477
      %v1480 = vmul.f32 %v1329, %v1478
      %v1481 = vmul.f32 %v1331, %v1479
      %v1482 = vmax.f32 %v1480, %v1481
      %1483 = vmax.xlane.f32.xlu0 %v1482
      %v1484 = vpop.xlane.xlu0 %1483
      %v1485 = vrot.slane %v1484, 4
      %v1486 = vmax.f32 %v1484, %v1485
      %v1487 = vrot.slane %v1486, 2
      %v1488 = vmax.f32 %v1486, %v1487
      %v1489 = vrot.slane %v1488, 1
      %v1490 = vmax.f32 %v1488, %v1489
      %v1491 = vrcp.pop %v1490
      %v1492 = vmul.f32 1.0, %v1491
      %v1493 = vmul.f32 %v1480, %v1492
      %v1494 = vmul.f32 %v1481, %v1492
      %v1495 = vadd.f32 %v1324, %v1493
      %v1496 = vadd.f32 %v1325, %v1494
      %v1497 = vmax.f32 %v1495, %v1496
      %1498 = vmax.xlane.f32.xlu0 %v1497
      %v1499 = vpop.xlane.xlu0 %1498
      %v1500 = vrot.slane %v1499, 4
      %v1501 = vmax.f32 %v1499, %v1500
      %v1502 = vrot.slane %v1501, 2
      %v1503 = vmax.f32 %v1501, %v1502
      %v1504 = vrot.slane %v1503, 1
      %v1505 = vmax.f32 %v1503, %v1504
      %v1506 = vrcp.pop %v1505
      %v1507 = vmul.f32 1.0, %v1506
      %v1508 = vmul.f32 %v1495, %v1507
      %v1509 = vmul.f32 %v1496, %v1507
      %v1510 = vmul.f32 %v1508, %v269
      %v1511 = vmul.f32 %v1509, %v270
      %vm1512 = vcmask 1043456
      %v1513 = vsel %vm1512, %v1510, 0.0
      %v1514 = vrot.slane %v1513, 4
      %v1515 = vadd.f32 %v1513, %v1514
      %v1516 = vrot.slane %v1515, 2
      %v1517 = vadd.f32 %v1515, %v1516
      %v1518 = vrot.slane %v1517, 1
      %v1519 = vadd.f32 %v1517, %v1518
      %v1520 = vsel %vm1512, %v1511, 0.0
      %v1521 = vrot.slane %v1520, 4
      %v1522 = vadd.f32 %v1520, %v1521
      %v1523 = vrot.slane %v1522, 2
      %v1524 = vadd.f32 %v1522, %v1523
      %v1525 = vrot.slane %v1524, 1
      %v1526 = vadd.f32 %v1524, %v1525
      %v1529 = vcombine.low %v1519, %v1526
      %v1531 = vunpack.c.l.s4 1966171168
      %v1532 = vunpack.c.0.s8 %v1531
      %v1533 = vlaneseq
      %v1534 = vshrl.u32 %v1533, 7
      %v1535 = vsub.s32 %v1532, %v1534
      %v1536 = vrot.slane %v1529, %v1535
      %v1538 = vunpack.c.l.s4 1966171168
      %v1539 = vunpack.c.0.s8 %v1538
      %v1540 = vlaneseq
      %v1541 = vshrl.u32 %v1540, 7
      %v1542 = vsub.s32 %v1539, %v1541
      %v1543 = vrot.slane %v1536, %v1542
      %v1545 = vlaneseq
      %vm1546 = vcmp.ge.s32.totalorder %v1545, 0
      %vm1547 = vcmp.lt.s32.totalorder %v1545, 256
      %vm1548 = vmand %vm1546, %vm1547
      %1549 = vst.msk [vmem:[%s259] ss:$2 sm:$0x3] %vm1548, %v1543
      %v1552 = vrot.slane %v1510, 4
      %v1553 = vrot.slane %v1511, 4
      %v1556 = vsel %vm1512, %v1552, 0.0
      %v1557 = vrot.slane %v1556, 4
      %v1558 = vadd.f32 %v1556, %v1557
      %v1559 = vrot.slane %v1558, 2
      %v1560 = vadd.f32 %v1558, %v1559
      %v1561 = vrot.slane %v1560, 1
      %v1562 = vadd.f32 %v1560, %v1561
      %v1563 = vsel %vm1512, %v1553, 0.0
      %v1564 = vrot.slane %v1563, 4
      %v1565 = vadd.f32 %v1563, %v1564
      %v1566 = vrot.slane %v1565, 2
      %v1567 = vadd.f32 %v1565, %v1566
      %v1568 = vrot.slane %v1567, 1
      %v1569 = vadd.f32 %v1567, %v1568
      %v1572 = vcombine.low %v1562, %v1569
      %v1574 = vunpack.c.l.s4 1966171168
      %v1575 = vunpack.c.0.s8 %v1574
      %v1576 = vlaneseq
      %v1577 = vshrl.u32 %v1576, 7
      %v1578 = vsub.s32 %v1575, %v1577
      %v1579 = vrot.slane %v1572, %v1578
      %v1581 = vunpack.c.l.s4 1966171168
      %v1582 = vunpack.c.0.s8 %v1581
      %v1583 = vlaneseq
      %v1584 = vshrl.u32 %v1583, 7
      %v1585 = vsub.s32 %v1582, %v1584
      %v1586 = vrot.slane %v1579, %v1585
      %s1588 = scalar_lea.vmem %s259, 1
      %1589 = vst.msk [vmem:[%s1588] ss:$2 sm:$0x3] %vm1548, %v1586
      %1590 = vst [vmem:[%s264] sm:$0xff] %v1508
      %1591 = vst [vmem:[%s264 + $0x8] sm:$0xff] %v1509
      %p1592 = scmp.lt.s32.totalorder %s18, 3
      %s1593 = scalar_select %p1592, %s18, 3
      %s1594 = smul.addr %s1593, 2
      %s1595 = smul.addr %s1594, 2
      %s1596 = scalar_lea.vmem %s5, %s1595
      %p1597 = scmp.lt.s32.totalorder %s18, 3
      %s1598 = scalar_select %p1597, %s18, 3
      %s1599 = smul.addr %s1598, 2
      %s1600 = smul.addr %s1599, 8
      %s1601 = scalar_lea.vmem %s6, %s1600
      // Predicated region
      $region41: #{single_head_2d_attention.1} parent=39 // pred_check
        %p1602 = pneg %p146
      $region42: #{single_head_2d_attention.1} parent=39 // pred_check_branch
        %1604 = sbr.rel (%p1602) target = $region44
      $region43: #{single_head_2d_attention.1} parent=39 // pred_region
        _
      $region44: #{single_head_2d_attention.1} parent=39 // pred_fallthru
        _
      // Predicated region
      $region45: #{single_head_2d_attention.1} parent=39 // pred_check
        %p1605 = pneg %p172
      $region46: #{single_head_2d_attention.1} parent=39 // pred_check_branch
        %1607 = sbr.rel (%p1605) target = $region48
      $region47: #{single_head_2d_attention.1} parent=39 // pred_region
        _
      $region48: #{single_head_2d_attention.1} parent=39 // pred_fallthru
        _
    $region40: #{single_head_2d_attention.1} parent=5 // pred_fallthru
      _
    %p1608 = scmp.le.s32.totalorder 2, %s13
    // Predicated region
    $region49: #{single_head_2d_attention.1} parent=5 // pred_check
      %p1609 = pneg %p1608
    $region50: #{single_head_2d_attention.1} parent=5 // pred_check_branch
      %1611 = sbr.rel (%p1609) target = $region52
    $region51: #{single_head_2d_attention.1} parent=5 // pred_region
      %s1612 = ssub.s32 %s13, 2
      // Predicated region
      $region53: #{single_head_2d_attention.1} parent=51 // pred_check
        %p1613 = pneg %p152
      $region54: #{single_head_2d_attention.1} parent=51 // pred_check_branch
        %1615 = sbr.rel (%p1613) target = $region56
      $region55: #{single_head_2d_attention.1} parent=51 // pred_region
        %p1616 = scmp.lt.s32.totalorder %s19, 3
        %s1617 = scalar_select %p1616, %s19, 3
        %s1618 = smul.addr %s1617, 2
        %s1619 = smul.addr %s1618, 2
        %s1620 = scalar_lea.vmem %s5, %s1619
      $region56: #{single_head_2d_attention.1} parent=51 // pred_fallthru
        _
      // Predicated region
      $region57: #{single_head_2d_attention.1} parent=51 // pred_check
        %p1621 = pneg %p178
      $region58: #{single_head_2d_attention.1} parent=51 // pred_check_branch
        %1623 = sbr.rel (%p1621) target = $region60
      $region59: #{single_head_2d_attention.1} parent=51 // pred_region
        %p1624 = scmp.lt.s32.totalorder %s19, 3
        %s1625 = scalar_select %p1624, %s19, 3
        %s1626 = smul.addr %s1625, 2
        %s1627 = smul.addr %s1626, 8
        %s1628 = scalar_lea.vmem %s6, %s1627
      $region60: #{single_head_2d_attention.1} parent=51 // pred_fallthru
        _
    $region52: #{single_head_2d_attention.1} parent=5 // pred_fallthru
      _
  $region6: #{single_head_2d_attention.1} parent=0 // loop_footer
    %s17 = sadd.s32 1, %s13
  $region7: #{single_head_2d_attention.1} parent=0 // loop_footer_branch
    %12 = sbr.rel target = $region3
  $region8: #{single_head_2d_attention.1} parent=0 // loop_exit
    _

</llo_original>
